<compile_context>
chip_gen: v7x
topology: tpu7x:2x2x1
jax: 0.10.0
libtpu: 0.0.40
codegen_flags: <defaults>
</compile_context>

<pallas_src>
import jax
import jax.numpy as jnp
from jax.experimental import pallas as pl
from jax.experimental.pallas import tpu as pltpu

# ----------------------------- "args" (synthetic, small) ---------------------
CB_BITS        = 4                      # vocab = 2**cb_bits = 16
EMBED_DIM      = 32                     # d_model
CODEBOOKS      = 4                      # nhead
FFN_DIM        = 64                     # dim_feedforward
DECODER_LAYERS = 2
SOURCE_DIM     = 32                     # FFN hidden dim
TOPK           = 2
OUT_DIM        = CODEBOOKS * TOPK       # 8
VOCAB          = 2 ** CB_BITS
HEAD_DIM       = EMBED_DIM // CODEBOOKS
LN_EPS         = 1e-5

B, S = 2, 8                             # batch, sequence length
BS   = B * S                            # 16 tokens total
G    = CODEBOOKS * BS                   # 64 = head-expanded key axis
OUT_PAD = 128                           # lane-dense padded output width

# packed per-layer slab row offsets (lane offset is always 0); all starts are
# multiples of 16 so every load is sublane-tile aligned for bf16.
R_WQKV, R_WO, R_W1, R_W2 = 0, 32, 64, 96
R_BIAS                   = 160          # 8 rows: bqkv, bo, b1, b2, n1w, n1b, n2w, n2b
LAYER_ROWS               = 168
# packed misc slab row offsets
M_EMB, M_FC1W, M_FC2W, M_FCB = 0, 16, 48, 80   # FCB holds fc1b (row 0) + fc2b (row 1)
M_HM, M_NEG                  = 96, 160          # head_mask (64 rows), -1e9 bias (16 rows)
MISC_ROWS                    = 176

# TODO(synk): the FFN head class is not shown in the reference snippet; assumed
# 2-layer MLP Linear(embed_dim->source_dim) -> ReLU -> Linear(source_dim->codebooks*topk).


# ----------------------------- Pallas kernel ---------------------------------
def _layer_norm(x, w, b):
    mu = jnp.mean(x, axis=-1, keepdims=True)
    xc = x - mu
    var = jnp.mean(xc * xc, axis=-1, keepdims=True)
    return xc * jax.lax.rsqrt(var + LN_EPS) * w + b


def decoder_kernel(onehot_ref, layers_ref, misc_ref, o_ref):
    f32 = jnp.float32

    # ---- constants from the pre-packed misc slab (no iota rebuilds) ----------
    # head_mask[j, e] = 1 iff row-block j//BS (head) owns embedding column e.
    head_mask = misc_ref[M_HM:M_HM + G, 0:EMBED_DIM].astype(f32)          # (64, 32)
    # neg_bias[i, j] = 0 for same-batch key columns, -1e9 otherwise.
    neg_bias = misc_ref[M_NEG:M_NEG + BS, 0:G].astype(f32)                # (16, 64)

    # ---- embedding lookup: pre-built one-hot @ table (vocab = 16) ------------
    embed = misc_ref[M_EMB:M_EMB + VOCAB, 0:EMBED_DIM].astype(f32)        # (16, 32)
    x = jnp.dot(onehot_ref[...], embed, preferred_element_type=f32)       # (16, 32)

    # ---- post-norm TransformerEncoderLayer x DECODER_LAYERS (unrolled) -------
    for l in range(DECODER_LAYERS):
        wqkv = layers_ref[l, R_WQKV:R_WQKV + EMBED_DIM, 0:3 * EMBED_DIM].astype(f32)
        wo   = layers_ref[l, R_WO:R_WO + EMBED_DIM, 0:EMBED_DIM].astype(f32)
        w1   = layers_ref[l, R_W1:R_W1 + EMBED_DIM, 0:FFN_DIM].astype(f32)
        w2   = layers_ref[l, R_W2:R_W2 + FFN_DIM, 0:EMBED_DIM].astype(f32)

        # one aligned (8, 128) load for all biases + LayerNorm params
        pb = layers_ref[l, R_BIAS:R_BIAS + 8, :].astype(f32)
        bqkv = pb[0:1, 0:3 * EMBED_DIM]
        bo   = pb[1:2, 0:EMBED_DIM]
        b1   = pb[2:3, 0:FFN_DIM]
        b2   = pb[3:4, 0:EMBED_DIM]
        n1w, n1b = pb[4:5, 0:EMBED_DIM], pb[5:6, 0:EMBED_DIM]
        n2w, n2b = pb[6:7, 0:EMBED_DIM], pb[7:8, 0:EMBED_DIM]

        # fused QKV projection (1/sqrt(head_dim) already folded into Q weight/bias)
        qkv = jnp.dot(x, wqkv, preferred_element_type=f32) + bqkv          # (16, 96)
        q = qkv[:, 0:EMBED_DIM]
        k = qkv[:, EMBED_DIM:2 * EMBED_DIM]
        v = qkv[:, 2 * EMBED_DIM:3 * EMBED_DIM]

        # block-diagonal head layout: row j holds token (j % BS) restricted to
        # head (j // BS) columns.  Single broadcast + reshape per tensor.
        k_bd = jnp.broadcast_to(k[None], (CODEBOOKS, BS, EMBED_DIM)).reshape(G, EMBED_DIM) * head_mask
        v_bd = jnp.broadcast_to(v[None], (CODEBOOKS, BS, EMBED_DIM)).reshape(G, EMBED_DIM) * head_mask

        # scores[i, j] = q_h(i) . k_h(token j%BS) for h = j // BS; cross-batch
        # columns are pushed to -1e9 so exp() zeroes them (no NaN hazard).
        scores = jax.lax.dot_general(q, k_bd, (((1,), (1,)), ((), ())),
                                     preferred_element_type=f32) + neg_bias  # (16, 64)
        m = jnp.max(scores, axis=-1, keepdims=True)
        p = jnp.exp(scores - m)                                            # invalid cols -> 0

        attn_un = jnp.dot(p, v_bd, preferred_element_type=f32)             # (16, 32)
        denom   = jnp.dot(p, head_mask, preferred_element_type=f32)        # (16, 32) per-head sums
        attn = attn_un * pl.reciprocal(denom, approx=True)                 # normalized, heads concat

        attn = jnp.dot(attn, wo, preferred_element_type=f32) + bo
        x = _layer_norm(x + attn, n1w, n1b)

        hidden = jnp.maximum(jnp.dot(x, w1, preferred_element_type=f32) + b1, 0.0)
        ff = jnp.dot(hidden, w2, preferred_element_type=f32) + b2
        x = _layer_norm(x + ff, n2w, n2b)

    # ---- head FFN: embed_dim -> source_dim -> codebooks*topk (lane-padded) ---
    fc1w = misc_ref[M_FC1W:M_FC1W + EMBED_DIM, 0:SOURCE_DIM].astype(f32)   # (32, 32)
    fc2w = misc_ref[M_FC2W:M_FC2W + SOURCE_DIM, :].astype(f32)             # (32, 128) padded
    fcb  = misc_ref[M_FCB:M_FCB + 2, :].astype(f32)                        # (2, 128)
    fc1b = fcb[0:1, 0:SOURCE_DIM]
    fc2b = fcb[1:2, :]                                                     # (1, 128) padded

    h = jnp.maximum(jnp.dot(x, fc1w, preferred_element_type=f32) + fc1b, 0.0)
    out = jnp.dot(h, fc2w, preferred_element_type=f32) + fc2b              # (16, 128)
    o_ref[...] = out.astype(o_ref.dtype)                                   # lane-dense store


# ----------------------------- packing (done once, outside jit) ---------------
def pack_params(p):
    scale = 1.0 / (HEAD_DIM ** 0.5)
    L = DECODER_LAYERS
    wqkv = p["wqkv"].at[:, :, :EMBED_DIM].multiply(scale)             # fold scale into Q
    bqkv = p["bqkv"].at[:, :, :EMBED_DIM].multiply(scale)

    layers = jnp.zeros((L, LAYER_ROWS, 128), jnp.float32)
    layers = layers.at[:, R_WQKV:R_WQKV + EMBED_DIM, 0:3 * EMBED_DIM].set(wqkv)
    layers = layers.at[:, R_WO:R_WO + EMBED_DIM, 0:EMBED_DIM].set(p["wo"])
    layers = layers.at[:, R_W1:R_W1 + EMBED_DIM, 0:FFN_DIM].set(p["w1"])
    layers = layers.at[:, R_W2:R_W2 + FFN_DIM, 0:EMBED_DIM].set(p["w2"])
    # bias / LayerNorm block: 8 rows starting at an aligned offset
    layers = layers.at[:, R_BIAS + 0:R_BIAS + 1, 0:3 * EMBED_DIM].set(bqkv)
    layers = layers.at[:, R_BIAS + 1:R_BIAS + 2, 0:EMBED_DIM].set(p["bo"])
    layers = layers.at[:, R_BIAS + 2:R_BIAS + 3, 0:FFN_DIM].set(p["b1"])
    layers = layers.at[:, R_BIAS + 3:R_BIAS + 4, 0:EMBED_DIM].set(p["b2"])
    layers = layers.at[:, R_BIAS + 4:R_BIAS + 5, 0:EMBED_DIM].set(p["n1w"])
    layers = layers.at[:, R_BIAS + 5:R_BIAS + 6, 0:EMBED_DIM].set(p["n1b"])
    layers = layers.at[:, R_BIAS + 6:R_BIAS + 7, 0:EMBED_DIM].set(p["n2w"])
    layers = layers.at[:, R_BIAS + 7:R_BIAS + 8, 0:EMBED_DIM].set(p["n2b"])

    misc = jnp.zeros((MISC_ROWS, 128), jnp.float32)
    misc = misc.at[M_EMB:M_EMB + VOCAB, 0:EMBED_DIM].set(p["embed"])
    misc = misc.at[M_FC1W:M_FC1W + EMBED_DIM, 0:SOURCE_DIM].set(p["fc1w"])
    misc = misc.at[M_FC2W:M_FC2W + SOURCE_DIM, 0:OUT_DIM].set(p["fc2w"])
    misc = misc.at[M_FCB + 0:M_FCB + 1, 0:SOURCE_DIM].set(p["fc1b"])
    misc = misc.at[M_FCB + 1:M_FCB + 2, 0:OUT_DIM].set(p["fc2b"])

    # precomputed attention masks
    row_head = jnp.arange(G)[:, None] // BS                           # (64, 1)
    col_head = jnp.arange(EMBED_DIM)[None, :] // HEAD_DIM             # (1, 32)
    head_mask = (row_head == col_head).astype(jnp.float32)            # (64, 32)
    q_batch = jnp.arange(BS)[:, None] // S                            # (16, 1)
    k_batch = (jnp.arange(G)[None, :] % BS) // S                      # (1, 64)
    valid = (q_batch == k_batch).astype(jnp.float32)                  # (16, 64)
    neg_bias = (valid - 1.0) * 1e9                                    # 0 valid / -1e9 invalid
    misc = misc.at[M_HM:M_HM + G, 0:EMBED_DIM].set(head_mask)
    misc = misc.at[M_NEG:M_NEG + BS, 0:G].set(neg_bias)

    # bf16 slabs: halves the exposed HBM->VMEM DMA; masks/ones are exact in bf16.
    return {"layers": layers.astype(jnp.bfloat16),
            "misc": misc.astype(jnp.bfloat16)}


# ----------------------------- wrapper ----------------------------------------
@jax.jit
def tf_enc_code_decoder(ids, packed):
    onehot = jax.nn.one_hot(ids.reshape(BS), VOCAB, dtype=jnp.float32)    # (16, 16)
    vmem_spec = pl.BlockSpec(memory_space=pltpu.MemorySpace.VMEM)
    out = pl.pallas_call(
        decoder_kernel,
        out_shape=jax.ShapeDtypeStruct((BS, OUT_PAD), jnp.float32),
        in_specs=[vmem_spec, vmem_spec, vmem_spec],
        out_specs=vmem_spec,
    )(onehot, packed["layers"], packed["misc"])
    return out[:, :OUT_DIM].reshape(B, S, OUT_DIM)


# ----------------------------- reference (pure JAX, f32) -----------------------
def reference(ids, p):
    x = jnp.take(p["embed"], ids, axis=0)                 # (B, S, E)
    scale = 1.0 / (HEAD_DIM ** 0.5)

    def ln(x, w, b):
        mu = jnp.mean(x, axis=-1, keepdims=True)
        var = jnp.mean((x - mu) ** 2, axis=-1, keepdims=True)
        return (x - mu) * jax.lax.rsqrt(var + LN_EPS) * w + b

    for l in range(DECODER_LAYERS):
        qkv = x @ p["wqkv"][l] + p["bqkv"][l]
        q, k, v = (qkv[..., :EMBED_DIM] * scale,
                   qkv[..., EMBED_DIM:2 * EMBED_DIM],
                   qkv[..., 2 * EMBED_DIM:])

        def split(t):
            return t.reshape(B, S, CODEBOOKS, HEAD_DIM).transpose(0, 2, 1, 3)

        qh, kh, vh = split(q), split(k), split(v)
        scores = jnp.einsum("bhqd,bhkd->bhqk", qh, kh)
        attn = jax.nn.softmax(scores, axis=-1)
        oh = jnp.einsum("bhqk,bhkd->bhqd", attn, vh)
        oh = oh.transpose(0, 2, 1, 3).reshape(B, S, EMBED_DIM)
        attn_out = oh @ p["wo"][l] + p["bo"][l]
        x = ln(x + attn_out, p["n1w"][l], p["n1b"][l])
        ff = jnp.maximum(x @ p["w1"][l] + p["b1"][l], 0.0) @ p["w2"][l] + p["b2"][l]
        x = ln(x + ff, p["n2w"][l], p["n2b"][l])

    h = jnp.maximum(x @ p["fc1w"] + p["fc1b"], 0.0)
    return h @ p["fc2w"] + p["fc2b"]


# ----------------------------- params ------------------------------------------
def init_params(key):
    ks = jax.random.split(key, 16)
    s = 0.05
    L, E, F = DECODER_LAYERS, EMBED_DIM, FFN_DIM
    params = {
        "embed": jax.random.normal(ks[0], (VOCAB, E), jnp.float32),
        # per-layer attention (weights stored pre-transposed: (in, out))
        "wqkv": jax.random.normal(ks[1], (L, E, 3 * E), jnp.float32) * s,
        "bqkv": jax.random.normal(ks[2], (L, 1, 3 * E), jnp.float32) * s,
        "wo":   jax.random.normal(ks[3], (L, E, E), jnp.float32) * s,
        "bo":   jax.random.normal(ks[4], (L, 1, E), jnp.float32) * s,
        # per-layer feed-forward
        "w1":   jax.random.normal(ks[5], (L, E, F), jnp.float32) * s,
        "b1":   jax.random.normal(ks[6], (L, 1, F), jnp.float32) * s,
        "w2":   jax.random.normal(ks[7], (L, F, E), jnp.float32) * s,
        "b2":   jax.random.normal(ks[8], (L, 1, E), jnp.float32) * s,
        # per-layer layernorms
        "n1w": jnp.ones((L, 1, E), jnp.float32),
        "n1b": jnp.zeros((L, 1, E), jnp.float32),
        "n2w": jnp.ones((L, 1, E), jnp.float32),
        "n2b": jnp.zeros((L, 1, E), jnp.float32),
        # head FFN
        "fc1w": jax.random.normal(ks[9], (E, SOURCE_DIM), jnp.float32) * s,
        "fc1b": jax.random.normal(ks[10], (1, SOURCE_DIM), jnp.float32) * s,
        "fc2w": jax.random.normal(ks[11], (SOURCE_DIM, OUT_DIM), jnp.float32) * s,
        "fc2b": jax.random.normal(ks[12], (1, OUT_DIM), jnp.float32) * s,
    }
    return params


# ----------------------------- main ---------------------------------------------
if __name__ == "__main__":
    key = jax.random.PRNGKey(0)
    k_ids, k_par = jax.random.split(key)
    ids = jax.random.randint(k_ids, (B, S), 0, VOCAB, dtype=jnp.int32)
    params = init_params(k_par)
    packed = jax.tree.map(jax.block_until_ready, pack_params(params))

    out = tf_enc_code_decoder(ids, packed)
    out = jax.block_until_ready(out)

    ref = reference(ids, params)
    assert out.shape == (B, S, OUT_DIM), out.shape
    assert jnp.allclose(out, ref, rtol=2e-2, atol=2e-2), \
        f"max abs diff {jnp.max(jnp.abs(out - ref))}"

    print("KERNEL_OK")
</pallas_src>

<mosaic_0001>
module attributes {stable_mosaic.version = 11 : i64} {
  func.func @decoder_kernel(%arg0: memref<16x16xf32, #tpu.memory_space<vmem>>, %arg1: memref<2x168x128xbf16, #tpu.memory_space<vmem>>, %arg2: memref<176x128xbf16, #tpu.memory_space<vmem>>, %arg3: memref<16x128xf32, #tpu.memory_space<vmem>>) attributes {dimension_semantics = [], scalar_prefetch = 0 : i64, scratch_operands = 0 : i64, tpu.core_type = #tpu.core_type<tc>} {
    %c96 = arith.constant 96 : index
    %c0 = arith.constant 0 : index
    %0 = vector.load %arg2[%c96, %c0] : memref<176x128xbf16, #tpu.memory_space<vmem>>, vector<64x32xbf16>
    %1 = arith.extf %0 : vector<64x32xbf16> to vector<64x32xf32>
    %c160 = arith.constant 160 : index
    %c0_0 = arith.constant 0 : index
    %2 = vector.load %arg2[%c160, %c0_0] : memref<176x128xbf16, #tpu.memory_space<vmem>>, vector<16x64xbf16>
    %3 = arith.extf %2 : vector<16x64xbf16> to vector<16x64xf32>
    %c0_1 = arith.constant 0 : index
    %c0_2 = arith.constant 0 : index
    %4 = vector.load %arg2[%c0_1, %c0_2] : memref<176x128xbf16, #tpu.memory_space<vmem>>, vector<16x32xbf16>
    %5 = arith.extf %4 : vector<16x32xbf16> to vector<16x32xf32>
    %c0_3 = arith.constant 0 : index
    %c0_4 = arith.constant 0 : index
    %6 = vector.load %arg0[%c0_3, %c0_4] : memref<16x16xf32, #tpu.memory_space<vmem>>, vector<16x16xf32>
    %cst = arith.constant dense<0.000000e+00> : vector<16x32xf32>
    %7 = tpu.matmul %6, %5, %cst {dimension_numbers = #tpu.dot_dimension_numbers<[1], [0], [0], [1], [0, 0, 1, 1], [], []>} : vector<16x16xf32>, vector<16x32xf32>, vector<16x32xf32> -> vector<16x32xf32>
    %c0_5 = arith.constant 0 : index
    %c0_6 = arith.constant 0 : index
    %c0_7 = arith.constant 0 : index
    %8 = vector.load %arg1[%c0_5, %c0_6, %c0_7] : memref<2x168x128xbf16, #tpu.memory_space<vmem>>, vector<1x32x96xbf16>
    %9 = vector.shape_cast %8 : vector<1x32x96xbf16> to vector<32x96xbf16>
    %10 = arith.extf %9 : vector<32x96xbf16> to vector<32x96xf32>
    %c0_8 = arith.constant 0 : index
    %c32 = arith.constant 32 : index
    %c0_9 = arith.constant 0 : index
    %11 = vector.load %arg1[%c0_8, %c32, %c0_9] : memref<2x168x128xbf16, #tpu.memory_space<vmem>>, vector<1x32x32xbf16>
    %12 = vector.shape_cast %11 : vector<1x32x32xbf16> to vector<32x32xbf16>
    %13 = arith.extf %12 : vector<32x32xbf16> to vector<32x32xf32>
    %c0_10 = arith.constant 0 : index
    %c64 = arith.constant 64 : index
    %c0_11 = arith.constant 0 : index
    %14 = vector.load %arg1[%c0_10, %c64, %c0_11] : memref<2x168x128xbf16, #tpu.memory_space<vmem>>, vector<1x32x64xbf16>
    %15 = vector.shape_cast %14 : vector<1x32x64xbf16> to vector<32x64xbf16>
    %16 = arith.extf %15 : vector<32x64xbf16> to vector<32x64xf32>
    %c0_12 = arith.constant 0 : index
    %c96_13 = arith.constant 96 : index
    %c0_14 = arith.constant 0 : index
    %17 = vector.load %arg1[%c0_12, %c96_13, %c0_14] : memref<2x168x128xbf16, #tpu.memory_space<vmem>>, vector<1x64x32xbf16>
    %18 = vector.shape_cast %17 : vector<1x64x32xbf16> to vector<64x32xbf16>
    %19 = arith.extf %18 : vector<64x32xbf16> to vector<64x32xf32>
    %c0_15 = arith.constant 0 : index
    %c160_16 = arith.constant 160 : index
    %c0_17 = arith.constant 0 : index
    %20 = vector.load %arg1[%c0_15, %c160_16, %c0_17] : memref<2x168x128xbf16, #tpu.memory_space<vmem>>, vector<1x8x128xbf16>
    %21 = vector.shape_cast %20 : vector<1x8x128xbf16> to vector<8x128xbf16>
    %22 = arith.extf %21 : vector<8x128xbf16> to vector<8x128xf32>
    %23 = vector.extract_strided_slice %22 {offsets = [0, 0], sizes = [1, 96], strides = [1, 1]} : vector<8x128xf32> to vector<1x96xf32>
    %24 = vector.extract_strided_slice %22 {offsets = [1, 0], sizes = [1, 32], strides = [1, 1]} : vector<8x128xf32> to vector<1x32xf32>
    %25 = vector.extract_strided_slice %22 {offsets = [2, 0], sizes = [1, 64], strides = [1, 1]} : vector<8x128xf32> to vector<1x64xf32>
    %26 = vector.extract_strided_slice %22 {offsets = [3, 0], sizes = [1, 32], strides = [1, 1]} : vector<8x128xf32> to vector<1x32xf32>
    %27 = vector.extract_strided_slice %22 {offsets = [4, 0], sizes = [1, 32], strides = [1, 1]} : vector<8x128xf32> to vector<1x32xf32>
    %28 = vector.extract_strided_slice %22 {offsets = [5, 0], sizes = [1, 32], strides = [1, 1]} : vector<8x128xf32> to vector<1x32xf32>
    %29 = vector.extract_strided_slice %22 {offsets = [6, 0], sizes = [1, 32], strides = [1, 1]} : vector<8x128xf32> to vector<1x32xf32>
    %30 = vector.extract_strided_slice %22 {offsets = [7, 0], sizes = [1, 32], strides = [1, 1]} : vector<8x128xf32> to vector<1x32xf32>
    %cst_18 = arith.constant dense<0.000000e+00> : vector<16x96xf32>
    %31 = tpu.matmul %7, %10, %cst_18 {dimension_numbers = #tpu.dot_dimension_numbers<[1], [0], [0], [1], [0, 0, 1, 1], [], []>} : vector<16x32xf32>, vector<32x96xf32>, vector<16x96xf32> -> vector<16x96xf32>
    %32 = vector.broadcast %23 : vector<1x96xf32> to vector<16x96xf32>
    %33 = arith.addf %31, %32 : vector<16x96xf32>
    %34 = vector.extract_strided_slice %33 {offsets = [0, 0], sizes = [16, 32], strides = [1, 1]} : vector<16x96xf32> to vector<16x32xf32>
    %35 = vector.extract_strided_slice %33 {offsets = [0, 32], sizes = [16, 32], strides = [1, 1]} : vector<16x96xf32> to vector<16x32xf32>
    %36 = vector.extract_strided_slice %33 {offsets = [0, 64], sizes = [16, 32], strides = [1, 1]} : vector<16x96xf32> to vector<16x32xf32>
    %37 = vector.shape_cast %35 : vector<16x32xf32> to vector<1x16x32xf32>
    %38 = vector.shape_cast %37 : vector<1x16x32xf32> to vector<1x16x32xf32>
    %39 = vector.broadcast %38 : vector<1x16x32xf32> to vector<4x16x32xf32>
    %40 = vector.shape_cast %39 : vector<4x16x32xf32> to vector<64x32xf32>
    %41 = arith.mulf %40, %1 : vector<64x32xf32>
    %42 = vector.shape_cast %36 : vector<16x32xf32> to vector<1x16x32xf32>
    %43 = vector.shape_cast %42 : vector<1x16x32xf32> to vector<1x16x32xf32>
    %44 = vector.broadcast %43 : vector<1x16x32xf32> to vector<4x16x32xf32>
    %45 = vector.shape_cast %44 : vector<4x16x32xf32> to vector<64x32xf32>
    %46 = arith.mulf %45, %1 : vector<64x32xf32>
    %cst_19 = arith.constant dense<0.000000e+00> : vector<16x64xf32>
    %47 = tpu.matmul %34, %41, %cst_19 {dimension_numbers = #tpu.dot_dimension_numbers<[1], [1], [0], [0], [0, 0, 1, 0], [], []>} : vector<16x32xf32>, vector<64x32xf32>, vector<16x64xf32> -> vector<16x64xf32>
    %48 = arith.addf %47, %3 : vector<16x64xf32>
    %cst_20 = arith.constant dense<0xFF800000> : vector<16xf32>
    %49 = vector.multi_reduction <maximumf>, %48, %cst_20 [1] : vector<16x64xf32> to vector<16xf32>
    %50 = vector.shape_cast %49 : vector<16xf32> to vector<16x1xf32>
    %51 = vector.broadcast %50 : vector<16x1xf32> to vector<16x64xf32>
    %52 = arith.subf %48, %51 : vector<16x64xf32>
    %53 = math.exp %52 : vector<16x64xf32>
    %cst_21 = arith.constant dense<0.000000e+00> : vector<16x32xf32>
    %54 = tpu.matmul %53, %46, %cst_21 {dimension_numbers = #tpu.dot_dimension_numbers<[1], [0], [0], [1], [0, 0, 1, 1], [], []>} : vector<16x64xf32>, vector<64x32xf32>, vector<16x32xf32> -> vector<16x32xf32>
    %cst_22 = arith.constant dense<0.000000e+00> : vector<16x32xf32>
    %55 = tpu.matmul %53, %1, %cst_22 {dimension_numbers = #tpu.dot_dimension_numbers<[1], [0], [0], [1], [0, 0, 1, 1], [], []>} : vector<16x64xf32>, vector<64x32xf32>, vector<16x32xf32> -> vector<16x32xf32>
    %56 = tpu.reciprocal %55 {approx = true} : vector<16x32xf32> -> vector<16x32xf32>
    %57 = arith.mulf %54, %56 : vector<16x32xf32>
    %cst_23 = arith.constant dense<0.000000e+00> : vector<16x32xf32>
    %58 = tpu.matmul %57, %13, %cst_23 {dimension_numbers = #tpu.dot_dimension_numbers<[1], [0], [0], [1], [0, 0, 1, 1], [], []>} : vector<16x32xf32>, vector<32x32xf32>, vector<16x32xf32> -> vector<16x32xf32>
    %59 = vector.broadcast %24 : vector<1x32xf32> to vector<16x32xf32>
    %60 = arith.addf %58, %59 : vector<16x32xf32>
    %61 = arith.addf %7, %60 : vector<16x32xf32>
    %cst_24 = arith.constant dense<0.000000e+00> : vector<16xf32>
    %62 = vector.multi_reduction <add>, %61, %cst_24 [1] : vector<16x32xf32> to vector<16xf32>
    %63 = vector.shape_cast %62 : vector<16xf32> to vector<16x1xf32>
    %cst_25 = arith.constant 3.200000e+01 : f32
    %64 = vector.broadcast %cst_25 : f32 to vector<16x1xf32>
    %65 = arith.divf %63, %64 : vector<16x1xf32>
    %66 = vector.broadcast %65 : vector<16x1xf32> to vector<16x32xf32>
    %67 = arith.subf %61, %66 : vector<16x32xf32>
    %68 = arith.mulf %67, %67 : vector<16x32xf32>
    %cst_26 = arith.constant dense<0.000000e+00> : vector<16xf32>
    %69 = vector.multi_reduction <add>, %68, %cst_26 [1] : vector<16x32xf32> to vector<16xf32>
    %70 = vector.shape_cast %69 : vector<16xf32> to vector<16x1xf32>
    %cst_27 = arith.constant 3.200000e+01 : f32
    %71 = vector.broadcast %cst_27 : f32 to vector<16x1xf32>
    %72 = arith.divf %70, %71 : vector<16x1xf32>
    %cst_28 = arith.constant 9.99999974E-6 : f32
    %73 = vector.broadcast %cst_28 : f32 to vector<16x1xf32>
    %74 = arith.addf %72, %73 : vector<16x1xf32>
    %75 = math.rsqrt %74 : vector<16x1xf32>
    %76 = vector.broadcast %75 : vector<16x1xf32> to vector<16x32xf32>
    %77 = arith.mulf %67, %76 : vector<16x32xf32>
    %78 = vector.broadcast %27 : vector<1x32xf32> to vector<16x32xf32>
    %79 = arith.mulf %77, %78 : vector<16x32xf32>
    %80 = vector.broadcast %28 : vector<1x32xf32> to vector<16x32xf32>
    %81 = arith.addf %79, %80 : vector<16x32xf32>
    %cst_29 = arith.constant dense<0.000000e+00> : vector<16x64xf32>
    %82 = tpu.matmul %81, %16, %cst_29 {dimension_numbers = #tpu.dot_dimension_numbers<[1], [0], [0], [1], [0, 0, 1, 1], [], []>} : vector<16x32xf32>, vector<32x64xf32>, vector<16x64xf32> -> vector<16x64xf32>
    %83 = vector.broadcast %25 : vector<1x64xf32> to vector<16x64xf32>
    %84 = arith.addf %82, %83 : vector<16x64xf32>
    %cst_30 = arith.constant 0.000000e+00 : f32
    %85 = vector.broadcast %cst_30 : f32 to vector<16x64xf32>
    %86 = arith.maximumf %84, %85 : vector<16x64xf32>
    %cst_31 = arith.constant dense<0.000000e+00> : vector<16x32xf32>
    %87 = tpu.matmul %86, %19, %cst_31 {dimension_numbers = #tpu.dot_dimension_numbers<[1], [0], [0], [1], [0, 0, 1, 1], [], []>} : vector<16x64xf32>, vector<64x32xf32>, vector<16x32xf32> -> vector<16x32xf32>
    %88 = vector.broadcast %26 : vector<1x32xf32> to vector<16x32xf32>
    %89 = arith.addf %87, %88 : vector<16x32xf32>
    %90 = arith.addf %81, %89 : vector<16x32xf32>
    %cst_32 = arith.constant dense<0.000000e+00> : vector<16xf32>
    %91 = vector.multi_reduction <add>, %90, %cst_32 [1] : vector<16x32xf32> to vector<16xf32>
    %92 = vector.shape_cast %91 : vector<16xf32> to vector<16x1xf32>
    %cst_33 = arith.constant 3.200000e+01 : f32
    %93 = vector.broadcast %cst_33 : f32 to vector<16x1xf32>
    %94 = arith.divf %92, %93 : vector<16x1xf32>
    %95 = vector.broadcast %94 : vector<16x1xf32> to vector<16x32xf32>
    %96 = arith.subf %90, %95 : vector<16x32xf32>
    %97 = arith.mulf %96, %96 : vector<16x32xf32>
    %cst_34 = arith.constant dense<0.000000e+00> : vector<16xf32>
    %98 = vector.multi_reduction <add>, %97, %cst_34 [1] : vector<16x32xf32> to vector<16xf32>
    %99 = vector.shape_cast %98 : vector<16xf32> to vector<16x1xf32>
    %cst_35 = arith.constant 3.200000e+01 : f32
    %100 = vector.broadcast %cst_35 : f32 to vector<16x1xf32>
    %101 = arith.divf %99, %100 : vector<16x1xf32>
    %cst_36 = arith.constant 9.99999974E-6 : f32
    %102 = vector.broadcast %cst_36 : f32 to vector<16x1xf32>
    %103 = arith.addf %101, %102 : vector<16x1xf32>
    %104 = math.rsqrt %103 : vector<16x1xf32>
    %105 = vector.broadcast %104 : vector<16x1xf32> to vector<16x32xf32>
    %106 = arith.mulf %96, %105 : vector<16x32xf32>
    %107 = vector.broadcast %29 : vector<1x32xf32> to vector<16x32xf32>
    %108 = arith.mulf %106, %107 : vector<16x32xf32>
    %109 = vector.broadcast %30 : vector<1x32xf32> to vector<16x32xf32>
    %110 = arith.addf %108, %109 : vector<16x32xf32>
    %c1 = arith.constant 1 : index
    %c0_37 = arith.constant 0 : index
    %c0_38 = arith.constant 0 : index
    %111 = vector.load %arg1[%c1, %c0_37, %c0_38] : memref<2x168x128xbf16, #tpu.memory_space<vmem>>, vector<1x32x96xbf16>
    %112 = vector.shape_cast %111 : vector<1x32x96xbf16> to vector<32x96xbf16>
    %113 = arith.extf %112 : vector<32x96xbf16> to vector<32x96xf32>
    %c1_39 = arith.constant 1 : index
    %c32_40 = arith.constant 32 : index
    %c0_41 = arith.constant 0 : index
    %114 = vector.load %arg1[%c1_39, %c32_40, %c0_41] : memref<2x168x128xbf16, #tpu.memory_space<vmem>>, vector<1x32x32xbf16>
    %115 = vector.shape_cast %114 : vector<1x32x32xbf16> to vector<32x32xbf16>
    %116 = arith.extf %115 : vector<32x32xbf16> to vector<32x32xf32>
    %c1_42 = arith.constant 1 : index
    %c64_43 = arith.constant 64 : index
    %c0_44 = arith.constant 0 : index
    %117 = vector.load %arg1[%c1_42, %c64_43, %c0_44] : memref<2x168x128xbf16, #tpu.memory_space<vmem>>, vector<1x32x64xbf16>
    %118 = vector.shape_cast %117 : vector<1x32x64xbf16> to vector<32x64xbf16>
    %119 = arith.extf %118 : vector<32x64xbf16> to vector<32x64xf32>
    %c1_45 = arith.constant 1 : index
    %c96_46 = arith.constant 96 : index
    %c0_47 = arith.constant 0 : index
    %120 = vector.load %arg1[%c1_45, %c96_46, %c0_47] : memref<2x168x128xbf16, #tpu.memory_space<vmem>>, vector<1x64x32xbf16>
    %121 = vector.shape_cast %120 : vector<1x64x32xbf16> to vector<64x32xbf16>
    %122 = arith.extf %121 : vector<64x32xbf16> to vector<64x32xf32>
    %c1_48 = arith.constant 1 : index
    %c160_49 = arith.constant 160 : index
    %c0_50 = arith.constant 0 : index
    %123 = vector.load %arg1[%c1_48, %c160_49, %c0_50] : memref<2x168x128xbf16, #tpu.memory_space<vmem>>, vector<1x8x128xbf16>
    %124 = vector.shape_cast %123 : vector<1x8x128xbf16> to vector<8x128xbf16>
    %125 = arith.extf %124 : vector<8x128xbf16> to vector<8x128xf32>
    %126 = vector.extract_strided_slice %125 {offsets = [0, 0], sizes = [1, 96], strides = [1, 1]} : vector<8x128xf32> to vector<1x96xf32>
    %127 = vector.extract_strided_slice %125 {offsets = [1, 0], sizes = [1, 32], strides = [1, 1]} : vector<8x128xf32> to vector<1x32xf32>
    %128 = vector.extract_strided_slice %125 {offsets = [2, 0], sizes = [1, 64], strides = [1, 1]} : vector<8x128xf32> to vector<1x64xf32>
    %129 = vector.extract_strided_slice %125 {offsets = [3, 0], sizes = [1, 32], strides = [1, 1]} : vector<8x128xf32> to vector<1x32xf32>
    %130 = vector.extract_strided_slice %125 {offsets = [4, 0], sizes = [1, 32], strides = [1, 1]} : vector<8x128xf32> to vector<1x32xf32>
    %131 = vector.extract_strided_slice %125 {offsets = [5, 0], sizes = [1, 32], strides = [1, 1]} : vector<8x128xf32> to vector<1x32xf32>
    %132 = vector.extract_strided_slice %125 {offsets = [6, 0], sizes = [1, 32], strides = [1, 1]} : vector<8x128xf32> to vector<1x32xf32>
    %133 = vector.extract_strided_slice %125 {offsets = [7, 0], sizes = [1, 32], strides = [1, 1]} : vector<8x128xf32> to vector<1x32xf32>
    %cst_51 = arith.constant dense<0.000000e+00> : vector<16x96xf32>
    %134 = tpu.matmul %110, %113, %cst_51 {dimension_numbers = #tpu.dot_dimension_numbers<[1], [0], [0], [1], [0, 0, 1, 1], [], []>} : vector<16x32xf32>, vector<32x96xf32>, vector<16x96xf32> -> vector<16x96xf32>
    %135 = vector.broadcast %126 : vector<1x96xf32> to vector<16x96xf32>
    %136 = arith.addf %134, %135 : vector<16x96xf32>
    %137 = vector.extract_strided_slice %136 {offsets = [0, 0], sizes = [16, 32], strides = [1, 1]} : vector<16x96xf32> to vector<16x32xf32>
    %138 = vector.extract_strided_slice %136 {offsets = [0, 32], sizes = [16, 32], strides = [1, 1]} : vector<16x96xf32> to vector<16x32xf32>
    %139 = vector.extract_strided_slice %136 {offsets = [0, 64], sizes = [16, 32], strides = [1, 1]} : vector<16x96xf32> to vector<16x32xf32>
    %140 = vector.shape_cast %138 : vector<16x32xf32> to vector<1x16x32xf32>
    %141 = vector.shape_cast %140 : vector<1x16x32xf32> to vector<1x16x32xf32>
    %142 = vector.broadcast %141 : vector<1x16x32xf32> to vector<4x16x32xf32>
    %143 = vector.shape_cast %142 : vector<4x16x32xf32> to vector<64x32xf32>
    %144 = arith.mulf %143, %1 : vector<64x32xf32>
    %145 = vector.shape_cast %139 : vector<16x32xf32> to vector<1x16x32xf32>
    %146 = vector.shape_cast %145 : vector<1x16x32xf32> to vector<1x16x32xf32>
    %147 = vector.broadcast %146 : vector<1x16x32xf32> to vector<4x16x32xf32>
    %148 = vector.shape_cast %147 : vector<4x16x32xf32> to vector<64x32xf32>
    %149 = arith.mulf %148, %1 : vector<64x32xf32>
    %cst_52 = arith.constant dense<0.000000e+00> : vector<16x64xf32>
    %150 = tpu.matmul %137, %144, %cst_52 {dimension_numbers = #tpu.dot_dimension_numbers<[1], [1], [0], [0], [0, 0, 1, 0], [], []>} : vector<16x32xf32>, vector<64x32xf32>, vector<16x64xf32> -> vector<16x64xf32>
    %151 = arith.addf %150, %3 : vector<16x64xf32>
    %cst_53 = arith.constant dense<0xFF800000> : vector<16xf32>
    %152 = vector.multi_reduction <maximumf>, %151, %cst_53 [1] : vector<16x64xf32> to vector<16xf32>
    %153 = vector.shape_cast %152 : vector<16xf32> to vector<16x1xf32>
    %154 = vector.broadcast %153 : vector<16x1xf32> to vector<16x64xf32>
    %155 = arith.subf %151, %154 : vector<16x64xf32>
    %156 = math.exp %155 : vector<16x64xf32>
    %cst_54 = arith.constant dense<0.000000e+00> : vector<16x32xf32>
    %157 = tpu.matmul %156, %149, %cst_54 {dimension_numbers = #tpu.dot_dimension_numbers<[1], [0], [0], [1], [0, 0, 1, 1], [], []>} : vector<16x64xf32>, vector<64x32xf32>, vector<16x32xf32> -> vector<16x32xf32>
    %cst_55 = arith.constant dense<0.000000e+00> : vector<16x32xf32>
    %158 = tpu.matmul %156, %1, %cst_55 {dimension_numbers = #tpu.dot_dimension_numbers<[1], [0], [0], [1], [0, 0, 1, 1], [], []>} : vector<16x64xf32>, vector<64x32xf32>, vector<16x32xf32> -> vector<16x32xf32>
    %159 = tpu.reciprocal %158 {approx = true} : vector<16x32xf32> -> vector<16x32xf32>
    %160 = arith.mulf %157, %159 : vector<16x32xf32>
    %cst_56 = arith.constant dense<0.000000e+00> : vector<16x32xf32>
    %161 = tpu.matmul %160, %116, %cst_56 {dimension_numbers = #tpu.dot_dimension_numbers<[1], [0], [0], [1], [0, 0, 1, 1], [], []>} : vector<16x32xf32>, vector<32x32xf32>, vector<16x32xf32> -> vector<16x32xf32>
    %162 = vector.broadcast %127 : vector<1x32xf32> to vector<16x32xf32>
    %163 = arith.addf %161, %162 : vector<16x32xf32>
    %164 = arith.addf %110, %163 : vector<16x32xf32>
    %cst_57 = arith.constant dense<0.000000e+00> : vector<16xf32>
    %165 = vector.multi_reduction <add>, %164, %cst_57 [1] : vector<16x32xf32> to vector<16xf32>
    %166 = vector.shape_cast %165 : vector<16xf32> to vector<16x1xf32>
    %cst_58 = arith.constant 3.200000e+01 : f32
    %167 = vector.broadcast %cst_58 : f32 to vector<16x1xf32>
    %168 = arith.divf %166, %167 : vector<16x1xf32>
    %169 = vector.broadcast %168 : vector<16x1xf32> to vector<16x32xf32>
    %170 = arith.subf %164, %169 : vector<16x32xf32>
    %171 = arith.mulf %170, %170 : vector<16x32xf32>
    %cst_59 = arith.constant dense<0.000000e+00> : vector<16xf32>
    %172 = vector.multi_reduction <add>, %171, %cst_59 [1] : vector<16x32xf32> to vector<16xf32>
    %173 = vector.shape_cast %172 : vector<16xf32> to vector<16x1xf32>
    %cst_60 = arith.constant 3.200000e+01 : f32
    %174 = vector.broadcast %cst_60 : f32 to vector<16x1xf32>
    %175 = arith.divf %173, %174 : vector<16x1xf32>
    %cst_61 = arith.constant 9.99999974E-6 : f32
    %176 = vector.broadcast %cst_61 : f32 to vector<16x1xf32>
    %177 = arith.addf %175, %176 : vector<16x1xf32>
    %178 = math.rsqrt %177 : vector<16x1xf32>
    %179 = vector.broadcast %178 : vector<16x1xf32> to vector<16x32xf32>
    %180 = arith.mulf %170, %179 : vector<16x32xf32>
    %181 = vector.broadcast %130 : vector<1x32xf32> to vector<16x32xf32>
    %182 = arith.mulf %180, %181 : vector<16x32xf32>
    %183 = vector.broadcast %131 : vector<1x32xf32> to vector<16x32xf32>
    %184 = arith.addf %182, %183 : vector<16x32xf32>
    %cst_62 = arith.constant dense<0.000000e+00> : vector<16x64xf32>
    %185 = tpu.matmul %184, %119, %cst_62 {dimension_numbers = #tpu.dot_dimension_numbers<[1], [0], [0], [1], [0, 0, 1, 1], [], []>} : vector<16x32xf32>, vector<32x64xf32>, vector<16x64xf32> -> vector<16x64xf32>
    %186 = vector.broadcast %128 : vector<1x64xf32> to vector<16x64xf32>
    %187 = arith.addf %185, %186 : vector<16x64xf32>
    %cst_63 = arith.constant 0.000000e+00 : f32
    %188 = vector.broadcast %cst_63 : f32 to vector<16x64xf32>
    %189 = arith.maximumf %187, %188 : vector<16x64xf32>
    %cst_64 = arith.constant dense<0.000000e+00> : vector<16x32xf32>
    %190 = tpu.matmul %189, %122, %cst_64 {dimension_numbers = #tpu.dot_dimension_numbers<[1], [0], [0], [1], [0, 0, 1, 1], [], []>} : vector<16x64xf32>, vector<64x32xf32>, vector<16x32xf32> -> vector<16x32xf32>
    %191 = vector.broadcast %129 : vector<1x32xf32> to vector<16x32xf32>
    %192 = arith.addf %190, %191 : vector<16x32xf32>
    %193 = arith.addf %184, %192 : vector<16x32xf32>
    %cst_65 = arith.constant dense<0.000000e+00> : vector<16xf32>
    %194 = vector.multi_reduction <add>, %193, %cst_65 [1] : vector<16x32xf32> to vector<16xf32>
    %195 = vector.shape_cast %194 : vector<16xf32> to vector<16x1xf32>
    %cst_66 = arith.constant 3.200000e+01 : f32
    %196 = vector.broadcast %cst_66 : f32 to vector<16x1xf32>
    %197 = arith.divf %195, %196 : vector<16x1xf32>
    %198 = vector.broadcast %197 : vector<16x1xf32> to vector<16x32xf32>
    %199 = arith.subf %193, %198 : vector<16x32xf32>
    %200 = arith.mulf %199, %199 : vector<16x32xf32>
    %cst_67 = arith.constant dense<0.000000e+00> : vector<16xf32>
    %201 = vector.multi_reduction <add>, %200, %cst_67 [1] : vector<16x32xf32> to vector<16xf32>
    %202 = vector.shape_cast %201 : vector<16xf32> to vector<16x1xf32>
    %cst_68 = arith.constant 3.200000e+01 : f32
    %203 = vector.broadcast %cst_68 : f32 to vector<16x1xf32>
    %204 = arith.divf %202, %203 : vector<16x1xf32>
    %cst_69 = arith.constant 9.99999974E-6 : f32
    %205 = vector.broadcast %cst_69 : f32 to vector<16x1xf32>
    %206 = arith.addf %204, %205 : vector<16x1xf32>
    %207 = math.rsqrt %206 : vector<16x1xf32>
    %208 = vector.broadcast %207 : vector<16x1xf32> to vector<16x32xf32>
    %209 = arith.mulf %199, %208 : vector<16x32xf32>
    %210 = vector.broadcast %132 : vector<1x32xf32> to vector<16x32xf32>
    %211 = arith.mulf %209, %210 : vector<16x32xf32>
    %212 = vector.broadcast %133 : vector<1x32xf32> to vector<16x32xf32>
    %213 = arith.addf %211, %212 : vector<16x32xf32>
    %c16 = arith.constant 16 : index
    %c0_70 = arith.constant 0 : index
    %214 = vector.load %arg2[%c16, %c0_70] : memref<176x128xbf16, #tpu.memory_space<vmem>>, vector<32x32xbf16>
    %215 = arith.extf %214 : vector<32x32xbf16> to vector<32x32xf32>
    %c48 = arith.constant 48 : index
    %c0_71 = arith.constant 0 : index
    %216 = vector.load %arg2[%c48, %c0_71] : memref<176x128xbf16, #tpu.memory_space<vmem>>, vector<32x128xbf16>
    %217 = arith.extf %216 : vector<32x128xbf16> to vector<32x128xf32>
    %c80 = arith.constant 80 : index
    %c0_72 = arith.constant 0 : index
    %218 = vector.load %arg2[%c80, %c0_72] : memref<176x128xbf16, #tpu.memory_space<vmem>>, vector<2x128xbf16>
    %219 = arith.extf %218 : vector<2x128xbf16> to vector<2x128xf32>
    %220 = vector.extract_strided_slice %219 {offsets = [0, 0], sizes = [1, 32], strides = [1, 1]} : vector<2x128xf32> to vector<1x32xf32>
    %221 = vector.extract_strided_slice %219 {offsets = [1, 0], sizes = [1, 128], strides = [1, 1]} : vector<2x128xf32> to vector<1x128xf32>
    %cst_73 = arith.constant dense<0.000000e+00> : vector<16x32xf32>
    %222 = tpu.matmul %213, %215, %cst_73 {dimension_numbers = #tpu.dot_dimension_numbers<[1], [0], [0], [1], [0, 0, 1, 1], [], []>} : vector<16x32xf32>, vector<32x32xf32>, vector<16x32xf32> -> vector<16x32xf32>
    %223 = vector.broadcast %220 : vector<1x32xf32> to vector<16x32xf32>
    %224 = arith.addf %222, %223 : vector<16x32xf32>
    %cst_74 = arith.constant 0.000000e+00 : f32
    %225 = vector.broadcast %cst_74 : f32 to vector<16x32xf32>
    %226 = arith.maximumf %224, %225 : vector<16x32xf32>
    %cst_75 = arith.constant dense<0.000000e+00> : vector<16x128xf32>
    %227 = tpu.matmul %226, %217, %cst_75 {dimension_numbers = #tpu.dot_dimension_numbers<[1], [0], [0], [1], [0, 0, 1, 1], [], []>} : vector<16x32xf32>, vector<32x128xf32>, vector<16x128xf32> -> vector<16x128xf32>
    %228 = vector.broadcast %221 : vector<1x128xf32> to vector<16x128xf32>
    %229 = arith.addf %227, %228 : vector<16x128xf32>
    %c0_76 = arith.constant 0 : index
    %c0_77 = arith.constant 0 : index
    %230 = vector.load %arg3[%c0_76, %c0_77] : memref<16x128xf32, #tpu.memory_space<vmem>>, vector<16x128xf32>
    tpu.vector_store %arg3[%c0_76, %c0_77], %229 {strides = array<i32>} : memref<16x128xf32, #tpu.memory_space<vmem>>, vector<16x128xf32>,
    return
  }
}

</mosaic_0001>

<llo_original>
// kernel: eq.1
$region0: #{eq.1}
  %s0 = inlined_call_operand.hbm [shape: s32[2,8], index: 0, kind: input, shape index: {}]
  %s1 = inlined_call_operand.vmem [shape: s32[16], index: 1, kind: output, shape index: {}]
  $region1: #{eq.1} parent=0
    #allocation0 [shape = 'u8[1024]{0}', space=vmem, size = 0x400, scoped, tag = 'operand span for operand 0']
    #allocation1 [shape = 's32[1]{0}', space=sflag, size = 0x4, scoped, tag = 'scoped memory for eq.1']
    #allocation2 [shape = 'u8[4096]{0}', space=vmem, size = 0x1000, scoped, tag = 'scoped mem for output reshape']
    #allocation3 [shape = 'u8[4096]{0}', space=vmem, size = 0x1000, scoped, tag = 'scoped mem for input reshape']
    %2 = vsyncpa [#allocation1], 0
    %s4 = ssub.s32 32, 32
    %5 = vsyncadd [#allocation1], %s4
    %s7 = sshll.u32 [#allocation0], 4
    %s8 = int_to_ptr.vmem [resolvable:$true] %s7
    %10 = dma.hbm_to_vmem [thread:$0]  %s0, 32, %s8, [#allocation1]
    %11 = dma.done [#allocation1], 32
    %s13 = sshllo.u32 0, 2
    %v14 = vld [vmem:[#allocation0] sm:%s13]
    %15 = vst [vmem:[#allocation3] sm:%s13] %v14
    %v16 = vld [vmem:[#allocation3] sm:$0x1]
    %vm17 = vcmask 64512
    %18 = vst.msk [vmem:[#allocation2] sm:$0x1] %vm17, %v16
    %s19 = scalar_lea.vmem [#allocation3], 1
    %v20 = vld [vmem:[%s19] sm:$0x1]
    %21 = vrot.lane.b32.xlu0 %v20, 8
    %v22 = vpop.permute.xlu0 %21
    %vm23 = vcmask 130112
    %24 = vst.msk [vmem:[#allocation2] sm:$0x1] %vm23, %v22
    %s26 = sshllo.u32 0, 1
    %v28 = vld [vmem:[#allocation2] sm:%s26]
    %s29 = sshllo.u32 0, 1
    %30 = vst [vmem:[%s1] sm:%s29] %v28
    %31 = vsyncpa [#allocation1], 1

// kernel: tf_enc_code_decoder.1
$region0: #{tf_enc_code_decoder.1}
  #allocation0 [shape = 'u32[]', space=smem, size = 0x4, offset = 0x4, fixed_abs, tag = 'smem constant byte address 0x4 - core index']
  #allocation1 [shape = 'u32[144,128]{1,0:T(1,128)}', space=vmem, size = 0x12000, scoped, tag = 'internal scratch']
  %s0 = inlined_call_operand.vmem [shape: f32[16,16], index: 0, kind: input, shape index: {}]
  %s1 = inlined_call_operand.hbm [shape: bf16[2,168,128], index: 1, kind: input, shape index: {}]
  %s2 = inlined_call_operand.hbm [shape: bf16[176,128], index: 2, kind: input, shape index: {}]
  %s3 = inlined_call_operand.vmem [shape: f32[16,128], index: 3, kind: output, shape index: {}]
  %s4 = sld [smem:[#allocation0]]
  $region30: #{tf_enc_code_decoder.1} parent=0
    _
  %s6 = ssub.s32 1, %s4
  %s7 = scalar_select 0, %s6, %s4
  $region1: #{tf_enc_code_decoder.1} parent=0
    #allocation2 [shape = 'u8[86016]{0}', space=vmem, size = 0x15000, scoped, tag = 'input window, operand 1, single buffered']
    #allocation3 [shape = 's32[1]{0}', space=sflag, size = 0x4, scoped, tag = 'scoped memory for tf_enc_code_decoder.1']
    #allocation4 [shape = 'u8[45056]{0}', space=vmem, size = 0xb000, scoped, tag = 'input window, operand 2, single buffered']
    #allocation5 [shape = 's32[1]{0}', space=sflag, size = 0x4, scoped, tag = 'scoped memory for tf_enc_code_decoder.1']
    %8 = vsyncpa [#allocation3], 0
    %9 = vsyncpa [#allocation5], 0
    // Predicated region
    $region2: #{tf_enc_code_decoder.1} parent=1 // pred_check
      _
    $region3: #{tf_enc_code_decoder.1} parent=1 // pred_check_branch
      %11 = sbr.rel (0) target = $region5
    $region4: #{tf_enc_code_decoder.1} parent=1 // pred_region
      _
    $region5: #{tf_enc_code_decoder.1} parent=1 // pred_fallthru
      _
    // Predicated region
    $region6: #{tf_enc_code_decoder.1} parent=1 // pred_check
      _
    $region7: #{tf_enc_code_decoder.1} parent=1 // pred_check_branch
      %13 = sbr.rel (0) target = $region9
    $region8: #{tf_enc_code_decoder.1} parent=1 // pred_region
      %s15 = ssub.s32 2688, 2688
      %16 = vsyncadd [#allocation3], %s15
      %s17 = sshll.u32 [#allocation2], 4
      %s18 = int_to_ptr.vmem [resolvable:$true] %s17
      %23 = dma.hbm_to_vmem [thread:$0]  %s1, 2688, %s18, [#allocation3], 64, 64, 4
    $region9: #{tf_enc_code_decoder.1} parent=1 // pred_fallthru
      _
    // Predicated region
    $region10: #{tf_enc_code_decoder.1} parent=1 // pred_check
      _
    $region11: #{tf_enc_code_decoder.1} parent=1 // pred_check_branch
      %25 = sbr.rel (0) target = $region13
    $region12: #{tf_enc_code_decoder.1} parent=1 // pred_region
      %s27 = ssub.s32 1408, 1408
      %28 = vsyncadd [#allocation5], %s27
      %s29 = sshll.u32 [#allocation4], 4
      %s30 = int_to_ptr.vmem [resolvable:$true] %s29
      %35 = dma.hbm_to_vmem [thread:$0]  %s2, 1408, %s30, [#allocation5], 64, 64, 4
    $region13: #{tf_enc_code_decoder.1} parent=1 // pred_fallthru
      _
    // Predicated region
    $region14: #{tf_enc_code_decoder.1} parent=1 // pred_check
      _
    $region15: #{tf_enc_code_decoder.1} parent=1 // pred_check_branch
      %37 = sbr.rel (0) target = $region17
    $region16: #{tf_enc_code_decoder.1} parent=1 // pred_region
      %38 = dma.done [#allocation3], 2688
    $region17: #{tf_enc_code_decoder.1} parent=1 // pred_fallthru
      _
    // Predicated region
    $region18: #{tf_enc_code_decoder.1} parent=1 // pred_check
      _
    $region19: #{tf_enc_code_decoder.1} parent=1 // pred_check_branch
      %40 = sbr.rel (0) target = $region21
    $region20: #{tf_enc_code_decoder.1} parent=1 // pred_region
      %41 = dma.done [#allocation5], 1408
    $region21: #{tf_enc_code_decoder.1} parent=1 // pred_fallthru
      _
    %v42 = vld [vmem:[#allocation4 + $0x30] sm:$0xf]
    %v43 = vld [vmem:[#allocation4 + $0x34] sm:$0xf]
    %v44 = vld [vmem:[#allocation4 + $0x38] sm:$0xf]
    %v45 = vld [vmem:[#allocation4 + $0x3c] sm:$0xf]
    %v46 = vld [vmem:[#allocation4 + $0x40] sm:$0xf]
    %v47 = vld [vmem:[#allocation4 + $0x44] sm:$0xf]
    %v48 = vld [vmem:[#allocation4 + $0x48] sm:$0xf]
    %v49 = vld [vmem:[#allocation4 + $0x4c] sm:$0xf]
    %v50 = vunpack.c.l.bf16 %v42
    %v51 = vunpack.c.l.bf16 %v43
    %v52 = vunpack.c.l.bf16 %v44
    %v53 = vunpack.c.l.bf16 %v45
    %v54 = vunpack.c.l.bf16 %v46
    %v55 = vunpack.c.l.bf16 %v47
    %v56 = vunpack.c.l.bf16 %v48
    %v57 = vunpack.c.l.bf16 %v49
    %v58 = vld [vmem:[#allocation4 + $0x50] sm:$0xf]
    %v59 = vld [vmem:[#allocation4 + $0x54] sm:$0xf]
    %v60 = vunpack.c.l.bf16 %v58
    %v61 = vunpack.c.l.bf16 %v59
    %v62 = vld [vmem:[#allocation4] sm:$0xf]
    %v63 = vld [vmem:[#allocation4 + $0x4] sm:$0xf]
    %v64 = vunpack.c.l.bf16 %v62
    %v65 = vunpack.c.l.bf16 %v63
    %v66 = vld [vmem:[%s0] sm:$0xff]
    %v67 = vld [vmem:[%s0 + $0x8] sm:$0xff]
    %vm68 = vcmask 130048
    %v70 = vsel %vm68, %v66, 0
    %v73 = vsel %vm68, %v67, 0
    %75 = vmatprep.subr.mxu0 0.0
    %76 = vmatpush1.msra.mxu0 %v64
    %77 = vmatprep.subr.mxu0 0.0
    %78 = vmatpush1.msra.mxu0 %v65
    %79 = vmatprep.subr.mxu0 0.0
    %80 = vmatpush1.msra.mxu0 0.0
    %81 = vmatprep.subr.mxu0 0.0
    %82 = vmatpush1.msra.mxu0 0.0
    %83 = vmatprep.subr.mxu0 0.0
    %84 = vmatpush1.msra.mxu0 0.0
    %85 = vmatprep.subr.mxu0 0.0
    %86 = vmatpush1.msra.mxu0 0.0
    %87 = vmatprep.subr.mxu0 0.0
    %88 = vmatpush1.msra.mxu0 0.0
    %89 = vmatprep.subr.mxu0 0.0
    %90 = vmatpush1.msra.mxu0 0.0
    %91 = vmatprep.subr.mxu0 0.0
    %92 = vmatpush1.msra.mxu0 0.0
    %93 = vmatprep.subr.mxu0 0.0
    %94 = vmatpush1.msra.mxu0 0.0
    %95 = vmatprep.subr.mxu0 0.0
    %96 = vmatpush1.msra.mxu0 0.0
    %97 = vmatprep.subr.mxu0 0.0
    %98 = vmatpush1.msra.mxu0 0.0
    %99 = vmatprep.subr.mxu0 0.0
    %100 = vmatpush1.msra.mxu0 0.0
    %101 = vmatprep.subr.mxu0 0.0
    %102 = vmatpush1.msra.mxu0 0.0
    %103 = vmatprep.subr.mxu0 0.0
    %104 = vmatpush1.msra.mxu0 0.0
    %105 = vmatprep.subr.mxu0 0.0
    %106 = vmatpush1.msra.mxu0 0.0
    %107 = vmatprep.subr.mxu0 0.0
    %108 = vmatpush1.msra.mxu0 0.0
    %109 = vmatprep.subr.mxu0 0.0
    %110 = vmatpush1.msra.mxu0 0.0
    %111 = vmatprep.subr.mxu0 0.0
    %112 = vmatpush1.msra.mxu0 0.0
    %113 = vmatprep.subr.mxu0 0.0
    %114 = vmatpush1.msra.mxu0 0.0
    %115 = vmatprep.subr.mxu0 0.0
    %116 = vmatpush1.msra.mxu0 0.0
    %117 = vmatprep.subr.mxu0 0.0
    %118 = vmatpush1.msra.mxu0 0.0
    %119 = vmatprep.subr.mxu0 0.0
    %120 = vmatpush1.msra.mxu0 0.0
    %121 = vmatprep.subr.mxu0 0.0
    %122 = vmatpush1.msra.mxu0 0.0
    %123 = vmatprep.subr.mxu0 0.0
    %124 = vmatpush1.msra.mxu0 0.0
    %125 = vmatprep.subr.mxu0 0.0
    %126 = vmatpush1.msra.mxu0 0.0
    %127 = vmatprep.subr.mxu0 0.0
    %128 = vmatpush1.msra.mxu0 0.0
    %129 = vmatprep.subr.mxu0 0.0
    %130 = vmatpush1.msra.mxu0 0.0
    %131 = vmatprep.subr.mxu0 0.0
    %132 = vmatpush1.msra.mxu0 0.0
    %133 = vmatprep.subr.mxu0 0.0
    %134 = vmatpush1.msra.mxu0 0.0
    %135 = vmatprep.subr.mxu0 0.0
    %136 = vmatpush1.msra.mxu0 0.0
    %137 = vmatprep.subr.mxu0 0.0
    %138 = vmatpush1.msra.mxu0 0.0
    %139 = vmatprep.mubr.f32.mxu0 0.0
    %140 = vmatmul.mubr.f32.gmra.mrb[0].mxu0 %v70
    %v141 = vpop.f32.mrb[0].mxu0
    %v142 = vadd.f32 0.0, %v141
    %v143 = vpop.f32.mrb[0].mxu0
    %144 = vmatprep.mubr.f32.mxu0 0.0
    %145 = vmatmul.mubr.f32.gmra.mrb[0].mxu0 %v73
    %v146 = vpop.f32.mrb[0].mxu0
    %v147 = vadd.f32 0.0, %v146
    %v148 = vpop.f32.mrb[0].mxu0
    %149 = vdwg.mxu0
    %v150 = vld [vmem:[#allocation2] sm:$0xf]
    %v151 = vld [vmem:[#allocation2 + $0x4] sm:$0xf]
    %v152 = vld [vmem:[#allocation2 + $0x8] sm:$0xf]
    %v153 = vld [vmem:[#allocation2 + $0xc] sm:$0xf]
    %v154 = vunpack.c.l.bf16 %v150
    %v155 = vunpack.c.l.bf16 %v151
    %v156 = vunpack.c.l.bf16 %v152
    %v157 = vunpack.c.l.bf16 %v153
    %v158 = vld [vmem:[#allocation2 + $0x10] sm:$0xf]
    %v159 = vld [vmem:[#allocation2 + $0x14] sm:$0xf]
    %v160 = vld [vmem:[#allocation2 + $0x18] sm:$0xf]
    %v161 = vld [vmem:[#allocation2 + $0x1c] sm:$0xf]
    %v162 = vunpack.c.l.bf16 %v158
    %v163 = vunpack.c.l.bf16 %v159
    %v164 = vunpack.c.l.bf16 %v160
    %v165 = vunpack.c.l.bf16 %v161
    %v166 = vld [vmem:[#allocation2 + $0x20] sm:$0xf]
    %v167 = vld [vmem:[#allocation2 + $0x24] sm:$0xf]
    %v168 = vld [vmem:[#allocation2 + $0x28] sm:$0xf]
    %v169 = vld [vmem:[#allocation2 + $0x2c] sm:$0xf]
    %v170 = vunpack.c.l.bf16 %v166
    %v171 = vunpack.c.l.bf16 %v167
    %v172 = vunpack.c.l.bf16 %v168
    %v173 = vunpack.c.l.bf16 %v169
    %v174 = vld [vmem:[#allocation2 + $0x30] sm:$0xf]
    %v175 = vld [vmem:[#allocation2 + $0x34] sm:$0xf]
    %v176 = vld [vmem:[#allocation2 + $0x38] sm:$0xf]
    %v177 = vld [vmem:[#allocation2 + $0x3c] sm:$0xf]
    %v178 = vld [vmem:[#allocation2 + $0x40] sm:$0xf]
    %v179 = vld [vmem:[#allocation2 + $0x44] sm:$0xf]
    %v180 = vld [vmem:[#allocation2 + $0x48] sm:$0xf]
    %v181 = vld [vmem:[#allocation2 + $0x4c] sm:$0xf]
    %v182 = vunpack.c.l.bf16 %v174
    %v183 = vunpack.c.l.bf16 %v175
    %v184 = vunpack.c.l.bf16 %v176
    %v185 = vunpack.c.l.bf16 %v177
    %v186 = vunpack.c.l.bf16 %v178
    %v187 = vunpack.c.l.bf16 %v179
    %v188 = vunpack.c.l.bf16 %v180
    %v189 = vunpack.c.l.bf16 %v181
    %v190 = vld [vmem:[#allocation2 + $0x50] sm:$0xf]
    %v191 = vunpack.c.l.bf16 %v190
    %v192 = vlaneseq
    %v193 = vshrl.u32 %v192, 7
    %v194 = vsub.s32 0, %v193
    %v195 = vrot.slane %v191, %v194
    %vm196 = vcmask 261120
    %v198 = vsel %vm196, %v142, 0
    %v201 = vsel %vm196, %v147, 0
    %203 = vmatprep.subr.mxu0 0.0
    %204 = vmatpush1.msra.mxu0 %v154
    %205 = vmatprep.subr.mxu0 0.0
    %206 = vmatpush1.msra.mxu0 %v155
    %207 = vmatprep.subr.mxu0 0.0
    %208 = vmatpush1.msra.mxu0 %v156
    %209 = vmatprep.subr.mxu0 0.0
    %210 = vmatpush1.msra.mxu0 %v157
    %211 = vmatprep.subr.mxu0 0.0
    %212 = vmatpush1.msra.mxu0 0.0
    %213 = vmatprep.subr.mxu0 0.0
    %214 = vmatpush1.msra.mxu0 0.0
    %215 = vmatprep.subr.mxu0 0.0
    %216 = vmatpush1.msra.mxu0 0.0
    %217 = vmatprep.subr.mxu0 0.0
    %218 = vmatpush1.msra.mxu0 0.0
    %219 = vmatprep.subr.mxu0 0.0
    %220 = vmatpush1.msra.mxu0 0.0
    %221 = vmatprep.subr.mxu0 0.0
    %222 = vmatpush1.msra.mxu0 0.0
    %223 = vmatprep.subr.mxu0 0.0
    %224 = vmatpush1.msra.mxu0 0.0
    %225 = vmatprep.subr.mxu0 0.0
    %226 = vmatpush1.msra.mxu0 0.0
    %227 = vmatprep.subr.mxu0 0.0
    %228 = vmatpush1.msra.mxu0 0.0
    %229 = vmatprep.subr.mxu0 0.0
    %230 = vmatpush1.msra.mxu0 0.0
    %231 = vmatprep.subr.mxu0 0.0
    %232 = vmatpush1.msra.mxu0 0.0
    %233 = vmatprep.subr.mxu0 0.0
    %234 = vmatpush1.msra.mxu0 0.0
    %235 = vmatprep.subr.mxu0 0.0
    %236 = vmatpush1.msra.mxu0 0.0
    %237 = vmatprep.subr.mxu0 0.0
    %238 = vmatpush1.msra.mxu0 0.0
    %239 = vmatprep.subr.mxu0 0.0
    %240 = vmatpush1.msra.mxu0 0.0
    %241 = vmatprep.subr.mxu0 0.0
    %242 = vmatpush1.msra.mxu0 0.0
    %243 = vmatprep.subr.mxu0 0.0
    %244 = vmatpush1.msra.mxu0 0.0
    %245 = vmatprep.subr.mxu0 0.0
    %246 = vmatpush1.msra.mxu0 0.0
    %247 = vmatprep.subr.mxu0 0.0
    %248 = vmatpush1.msra.mxu0 0.0
    %249 = vmatprep.subr.mxu0 0.0
    %250 = vmatpush1.msra.mxu0 0.0
    %251 = vmatprep.subr.mxu0 0.0
    %252 = vmatpush1.msra.mxu0 0.0
    %253 = vmatprep.subr.mxu0 0.0
    %254 = vmatpush1.msra.mxu0 0.0
    %255 = vmatprep.subr.mxu0 0.0
    %256 = vmatpush1.msra.mxu0 0.0
    %257 = vmatprep.subr.mxu0 0.0
    %258 = vmatpush1.msra.mxu0 0.0
    %259 = vmatprep.subr.mxu0 0.0
    %260 = vmatpush1.msra.mxu0 0.0
    %261 = vmatprep.subr.mxu0 0.0
    %262 = vmatpush1.msra.mxu0 0.0
    %263 = vmatprep.subr.mxu0 0.0
    %264 = vmatpush1.msra.mxu0 0.0
    %265 = vmatprep.subr.mxu0 0.0
    %266 = vmatpush1.msra.mxu0 0.0
    %267 = vmatprep.mubr.f32.mxu0 0.0
    %268 = vmatmul.mubr.f32.gmra.mrb[0].mxu0 %v198
    %v269 = vpop.f32.mrb[0].mxu0
    %v270 = vadd.f32 %v195, %v269
    %v271 = vpop.f32.mrb[0].mxu0
    %272 = vmatprep.mubr.f32.mxu0 0.0
    %273 = vmatmul.mubr.f32.gmra.mrb[0].mxu0 %v201
    %v274 = vpop.f32.mrb[0].mxu0
    %v275 = vadd.f32 %v195, %v274
    %v276 = vpop.f32.mrb[0].mxu0
    %277 = vdwg.mxu0
    %286 = vrot.lane.b32.xlu0 %v50, 32
    %v287 = vpop.permute.xlu0 %286
    %288 = vrot.lane.b32.xlu0 %v51, 32
    %v289 = vpop.permute.xlu0 %288
    %290 = vrot.lane.b32.xlu0 %v52, 32
    %v291 = vpop.permute.xlu0 %290
    %292 = vrot.lane.b32.xlu0 %v53, 32
    %v293 = vpop.permute.xlu0 %292
    %294 = vrot.lane.b32.xlu0 %v54, 32
    %v295 = vpop.permute.xlu0 %294
    %296 = vrot.lane.b32.xlu0 %v55, 32
    %v297 = vpop.permute.xlu0 %296
    %298 = vrot.lane.b32.xlu0 %v56, 32
    %v299 = vpop.permute.xlu0 %298
    %300 = vrot.lane.b32.xlu0 %v57, 32
    %v301 = vpop.permute.xlu0 %300
    %v310 = vmul.f32 %v270, %v287
    %v311 = vmul.f32 %v275, %v289
    %v312 = vmul.f32 %v270, %v291
    %v313 = vmul.f32 %v275, %v293
    %v314 = vmul.f32 %v270, %v295
    %v315 = vmul.f32 %v275, %v297
    %v316 = vmul.f32 %v270, %v299
    %v317 = vmul.f32 %v275, %v301
    %318 = vrot.lane.b32.xlu0 %v50, 64
    %v319 = vpop.permute.xlu0 %318
    %320 = vrot.lane.b32.xlu0 %v51, 64
    %v321 = vpop.permute.xlu0 %320
    %322 = vrot.lane.b32.xlu0 %v52, 64
    %v323 = vpop.permute.xlu0 %322
    %324 = vrot.lane.b32.xlu0 %v53, 64
    %v325 = vpop.permute.xlu0 %324
    %326 = vrot.lane.b32.xlu0 %v54, 64
    %v327 = vpop.permute.xlu0 %326
    %328 = vrot.lane.b32.xlu0 %v55, 64
    %v329 = vpop.permute.xlu0 %328
    %330 = vrot.lane.b32.xlu0 %v56, 64
    %v331 = vpop.permute.xlu0 %330
    %332 = vrot.lane.b32.xlu0 %v57, 64
    %v333 = vpop.permute.xlu0 %332
    %v342 = vmul.f32 %v270, %v319
    %v343 = vmul.f32 %v275, %v321
    %v344 = vmul.f32 %v270, %v323
    %v345 = vmul.f32 %v275, %v325
    %v346 = vmul.f32 %v270, %v327
    %v347 = vmul.f32 %v275, %v329
    %v348 = vmul.f32 %v270, %v331
    %v349 = vmul.f32 %v275, %v333
    %358 = vrot.lane.b32.xlu0 %v310, 96
    %v359 = vpop.permute.xlu0 %358
    %360 = vrot.lane.b32.xlu0 %v311, 96
    %v361 = vpop.permute.xlu0 %360
    %362 = vrot.lane.b32.xlu0 %v312, 96
    %v363 = vpop.permute.xlu0 %362
    %364 = vrot.lane.b32.xlu0 %v313, 96
    %v365 = vpop.permute.xlu0 %364
    %366 = vrot.lane.b32.xlu0 %v314, 96
    %v367 = vpop.permute.xlu0 %366
    %368 = vrot.lane.b32.xlu0 %v315, 96
    %v369 = vpop.permute.xlu0 %368
    %370 = vrot.lane.b32.xlu0 %v316, 96
    %v371 = vpop.permute.xlu0 %370
    %372 = vrot.lane.b32.xlu0 %v317, 96
    %v373 = vpop.permute.xlu0 %372
    %v375 = vsel %vm196, %v270, 0
    %v378 = vsel %vm196, %v275, 0
    %v380 = vsel %vm196, %v359, 0
    %v382 = vsel %vm196, %v361, 0
    %v384 = vsel %vm196, %v363, 0
    %v386 = vsel %vm196, %v365, 0
    %v388 = vsel %vm196, %v367, 0
    %v390 = vsel %vm196, %v369, 0
    %v392 = vsel %vm196, %v371, 0
    %v394 = vsel %vm196, %v373, 0
    %396 = vmatprep.subr.mxu0 0.0
    %397 = vmatpush1.xpose.msra.mxu0 %v380
    %398 = vmatprep.subr.mxu0 0.0
    %399 = vmatpush1.xpose.msra.mxu0 %v382
    %400 = vmatprep.subr.mxu0 0.0
    %401 = vmatpush1.xpose.msra.mxu0 %v384
    %402 = vmatprep.subr.mxu0 0.0
    %403 = vmatpush1.xpose.msra.mxu0 %v386
    %404 = vmatprep.subr.mxu0 0.0
    %405 = vmatpush1.xpose.msra.mxu0 %v388
    %406 = vmatprep.subr.mxu0 0.0
    %407 = vmatpush1.xpose.msra.mxu0 %v390
    %408 = vmatprep.subr.mxu0 0.0
    %409 = vmatpush1.xpose.msra.mxu0 %v392
    %410 = vmatprep.subr.mxu0 0.0
    %411 = vmatpush1.xpose.msra.mxu0 %v394
    %412 = vmatprep.subr.mxu0 0.0
    %413 = vmatpush1.xpose.msra.mxu0 0.0
    %414 = vmatprep.subr.mxu0 0.0
    %415 = vmatpush1.xpose.msra.mxu0 0.0
    %416 = vmatprep.subr.mxu0 0.0
    %417 = vmatpush1.xpose.msra.mxu0 0.0
    %418 = vmatprep.subr.mxu0 0.0
    %419 = vmatpush1.xpose.msra.mxu0 0.0
    %420 = vmatprep.subr.mxu0 0.0
    %421 = vmatpush1.xpose.msra.mxu0 0.0
    %422 = vmatprep.subr.mxu0 0.0
    %423 = vmatpush1.xpose.msra.mxu0 0.0
    %424 = vmatprep.subr.mxu0 0.0
    %425 = vmatpush1.xpose.msra.mxu0 0.0
    %426 = vmatprep.subr.mxu0 0.0
    %427 = vmatpush1.xpose.msra.mxu0 0.0
    %428 = vmatprep.subr.mxu0 0.0
    %429 = vmatpush1.xpose.msra.mxu0 0.0
    %430 = vmatprep.subr.mxu0 0.0
    %431 = vmatpush1.xpose.msra.mxu0 0.0
    %432 = vmatprep.subr.mxu0 0.0
    %433 = vmatpush1.xpose.msra.mxu0 0.0
    %434 = vmatprep.subr.mxu0 0.0
    %435 = vmatpush1.xpose.msra.mxu0 0.0
    %436 = vmatprep.subr.mxu0 0.0
    %437 = vmatpush1.xpose.msra.mxu0 0.0
    %438 = vmatprep.subr.mxu0 0.0
    %439 = vmatpush1.xpose.msra.mxu0 0.0
    %440 = vmatprep.subr.mxu0 0.0
    %441 = vmatpush1.xpose.msra.mxu0 0.0
    %442 = vmatprep.subr.mxu0 0.0
    %443 = vmatpush1.xpose.msra.mxu0 0.0
    %444 = vmatprep.subr.mxu0 0.0
    %445 = vmatpush1.xpose.msra.mxu0 0.0
    %446 = vmatprep.subr.mxu0 0.0
    %447 = vmatpush1.xpose.msra.mxu0 0.0
    %448 = vmatprep.subr.mxu0 0.0
    %449 = vmatpush1.xpose.msra.mxu0 0.0
    %450 = vmatprep.subr.mxu0 0.0
    %451 = vmatpush1.xpose.msra.mxu0 0.0
    %452 = vmatprep.subr.mxu0 0.0
    %453 = vmatpush1.xpose.msra.mxu0 0.0
    %454 = vmatprep.subr.mxu0 0.0
    %455 = vmatpush1.xpose.msra.mxu0 0.0
    %456 = vmatprep.subr.mxu0 0.0
    %457 = vmatpush1.xpose.msra.mxu0 0.0
    %458 = vmatprep.subr.mxu0 0.0
    %459 = vmatpush1.xpose.msra.mxu0 0.0
    %460 = vmatprep.mubr.f32.mxu0 0.0
    %461 = vmatmul.mubr.f32.gmra.mrb[0].mxu0 %v375
    %v462 = vpop.f32.mrb[0].mxu0
    %v463 = vadd.f32 %v60, %v462
    %v464 = vpop.f32.mrb[0].mxu0
    %465 = vmatprep.mubr.f32.mxu0 0.0
    %466 = vmatmul.mubr.f32.gmra.mrb[0].mxu0 %v378
    %v467 = vpop.f32.mrb[0].mxu0
    %v468 = vadd.f32 %v61, %v467
    %v469 = vpop.f32.mrb[0].mxu0
    %470 = vdwg.mxu0
    %vm471 = vcmask 523264
    %v472 = vsel %vm471, %v463, -inf
    %473 = vmax.xlane.f32.xlu0 %v472
    %v474 = vpop.xlane.xlu0 %473
    %v475 = vsel %vm471, %v468, -inf
    %476 = vmax.xlane.f32.xlu0 %v475
    %v477 = vpop.xlane.xlu0 %476
    %v478 = vsub.f32 %v463, %v474
    %v479 = vsub.f32 %v468, %v477
    %v480 = vmul.f32 %v478, 1.442695
    %v481 = vpow.pop %v480
    %v482 = vmul.f32 %v479, 1.442695
    %v483 = vpow.pop %v482
    %492 = vrot.lane.b32.xlu0 %v342, 64
    %v493 = vpop.permute.xlu0 %492
    %494 = vrot.lane.b32.xlu0 %v343, 64
    %v495 = vpop.permute.xlu0 %494
    %496 = vrot.lane.b32.xlu0 %v344, 64
    %v497 = vpop.permute.xlu0 %496
    %498 = vrot.lane.b32.xlu0 %v345, 64
    %v499 = vpop.permute.xlu0 %498
    %500 = vrot.lane.b32.xlu0 %v346, 64
    %v501 = vpop.permute.xlu0 %500
    %502 = vrot.lane.b32.xlu0 %v347, 64
    %v503 = vpop.permute.xlu0 %502
    %504 = vrot.lane.b32.xlu0 %v348, 64
    %v505 = vpop.permute.xlu0 %504
    %506 = vrot.lane.b32.xlu0 %v349, 64
    %v507 = vpop.permute.xlu0 %506
    %v517 = vsel %vm471, %v481, 0
    %v520 = vsel %vm471, %v483, 0
    %522 = vmatprep.subr.mxu0 0.0
    %523 = vmatpush1.msra.mxu0 %v493
    %524 = vmatprep.subr.mxu0 0.0
    %525 = vmatpush1.msra.mxu0 %v495
    %526 = vmatprep.subr.mxu0 0.0
    %527 = vmatpush1.msra.mxu0 %v497
    %528 = vmatprep.subr.mxu0 0.0
    %529 = vmatpush1.msra.mxu0 %v499
    %530 = vmatprep.subr.mxu0 0.0
    %531 = vmatpush1.msra.mxu0 %v501
    %532 = vmatprep.subr.mxu0 0.0
    %533 = vmatpush1.msra.mxu0 %v503
    %534 = vmatprep.subr.mxu0 0.0
    %535 = vmatpush1.msra.mxu0 %v505
    %536 = vmatprep.subr.mxu0 0.0
    %537 = vmatpush1.msra.mxu0 %v507
    %538 = vmatprep.subr.mxu0 0.0
    %539 = vmatpush1.msra.mxu0 0.0
    %540 = vmatprep.subr.mxu0 0.0
    %541 = vmatpush1.msra.mxu0 0.0
    %542 = vmatprep.subr.mxu0 0.0
    %543 = vmatpush1.msra.mxu0 0.0
    %544 = vmatprep.subr.mxu0 0.0
    %545 = vmatpush1.msra.mxu0 0.0
    %546 = vmatprep.subr.mxu0 0.0
    %547 = vmatpush1.msra.mxu0 0.0
    %548 = vmatprep.subr.mxu0 0.0
    %549 = vmatpush1.msra.mxu0 0.0
    %550 = vmatprep.subr.mxu0 0.0
    %551 = vmatpush1.msra.mxu0 0.0
    %552 = vmatprep.subr.mxu0 0.0
    %553 = vmatpush1.msra.mxu0 0.0
    %554 = vmatprep.subr.mxu0 0.0
    %555 = vmatpush1.msra.mxu0 0.0
    %556 = vmatprep.subr.mxu0 0.0
    %557 = vmatpush1.msra.mxu0 0.0
    %558 = vmatprep.subr.mxu0 0.0
    %559 = vmatpush1.msra.mxu0 0.0
    %560 = vmatprep.subr.mxu0 0.0
    %561 = vmatpush1.msra.mxu0 0.0
    %562 = vmatprep.subr.mxu0 0.0
    %563 = vmatpush1.msra.mxu0 0.0
    %564 = vmatprep.subr.mxu0 0.0
    %565 = vmatpush1.msra.mxu0 0.0
    %566 = vmatprep.subr.mxu0 0.0
    %567 = vmatpush1.msra.mxu0 0.0
    %568 = vmatprep.subr.mxu0 0.0
    %569 = vmatpush1.msra.mxu0 0.0
    %570 = vmatprep.subr.mxu0 0.0
    %571 = vmatpush1.msra.mxu0 0.0
    %572 = vmatprep.subr.mxu0 0.0
    %573 = vmatpush1.msra.mxu0 0.0
    %574 = vmatprep.subr.mxu0 0.0
    %575 = vmatpush1.msra.mxu0 0.0
    %576 = vmatprep.subr.mxu0 0.0
    %577 = vmatpush1.msra.mxu0 0.0
    %578 = vmatprep.subr.mxu0 0.0
    %579 = vmatpush1.msra.mxu0 0.0
    %580 = vmatprep.subr.mxu0 0.0
    %581 = vmatpush1.msra.mxu0 0.0
    %582 = vmatprep.subr.mxu0 0.0
    %583 = vmatpush1.msra.mxu0 0.0
    %584 = vmatprep.subr.mxu0 0.0
    %585 = vmatpush1.msra.mxu0 0.0
    %586 = vmatprep.mubr.f32.mxu0 0.0
    %587 = vmatmul.mubr.f32.gmra.mrb[0].mxu0 %v517
    %v588 = vpop.f32.mrb[0].mxu0
    %v589 = vadd.f32 0.0, %v588
    %v590 = vpop.f32.mrb[0].mxu0
    %591 = vmatprep.mubr.f32.mxu0 0.0
    %592 = vmatmul.mubr.f32.gmra.mrb[0].mxu0 %v520
    %v593 = vpop.f32.mrb[0].mxu0
    %v594 = vadd.f32 0.0, %v593
    %v595 = vpop.f32.mrb[0].mxu0
    %596 = vdwg.mxu0
    %597 = vmatprep.subr.mxu0 0.0
    %598 = vmatpush1.msra.mxu0 %v50
    %599 = vmatprep.subr.mxu0 0.0
    %600 = vmatpush1.msra.mxu0 %v51
    %601 = vmatprep.subr.mxu0 0.0
    %602 = vmatpush1.msra.mxu0 %v52
    %603 = vmatprep.subr.mxu0 0.0
    %604 = vmatpush1.msra.mxu0 %v53
    %605 = vmatprep.subr.mxu0 0.0
    %606 = vmatpush1.msra.mxu0 %v54
    %607 = vmatprep.subr.mxu0 0.0
    %608 = vmatpush1.msra.mxu0 %v55
    %609 = vmatprep.subr.mxu0 0.0
    %610 = vmatpush1.msra.mxu0 %v56
    %611 = vmatprep.subr.mxu0 0.0
    %612 = vmatpush1.msra.mxu0 %v57
    %613 = vmatprep.subr.mxu0 0.0
    %614 = vmatpush1.msra.mxu0 0.0
    %615 = vmatprep.subr.mxu0 0.0
    %616 = vmatpush1.msra.mxu0 0.0
    %617 = vmatprep.subr.mxu0 0.0
    %618 = vmatpush1.msra.mxu0 0.0
    %619 = vmatprep.subr.mxu0 0.0
    %620 = vmatpush1.msra.mxu0 0.0
    %621 = vmatprep.subr.mxu0 0.0
    %622 = vmatpush1.msra.mxu0 0.0
    %623 = vmatprep.subr.mxu0 0.0
    %624 = vmatpush1.msra.mxu0 0.0
    %625 = vmatprep.subr.mxu0 0.0
    %626 = vmatpush1.msra.mxu0 0.0
    %627 = vmatprep.subr.mxu0 0.0
    %628 = vmatpush1.msra.mxu0 0.0
    %629 = vmatprep.subr.mxu0 0.0
    %630 = vmatpush1.msra.mxu0 0.0
    %631 = vmatprep.subr.mxu0 0.0
    %632 = vmatpush1.msra.mxu0 0.0
    %633 = vmatprep.subr.mxu0 0.0
    %634 = vmatpush1.msra.mxu0 0.0
    %635 = vmatprep.subr.mxu0 0.0
    %636 = vmatpush1.msra.mxu0 0.0
    %637 = vmatprep.subr.mxu0 0.0
    %638 = vmatpush1.msra.mxu0 0.0
    %639 = vmatprep.subr.mxu0 0.0
    %640 = vmatpush1.msra.mxu0 0.0
    %641 = vmatprep.subr.mxu0 0.0
    %642 = vmatpush1.msra.mxu0 0.0
    %643 = vmatprep.subr.mxu0 0.0
    %644 = vmatpush1.msra.mxu0 0.0
    %645 = vmatprep.subr.mxu0 0.0
    %646 = vmatpush1.msra.mxu0 0.0
    %647 = vmatprep.subr.mxu0 0.0
    %648 = vmatpush1.msra.mxu0 0.0
    %649 = vmatprep.subr.mxu0 0.0
    %650 = vmatpush1.msra.mxu0 0.0
    %651 = vmatprep.subr.mxu0 0.0
    %652 = vmatpush1.msra.mxu0 0.0
    %653 = vmatprep.subr.mxu0 0.0
    %654 = vmatpush1.msra.mxu0 0.0
    %655 = vmatprep.subr.mxu0 0.0
    %656 = vmatpush1.msra.mxu0 0.0
    %657 = vmatprep.subr.mxu0 0.0
    %658 = vmatpush1.msra.mxu0 0.0
    %659 = vmatprep.subr.mxu0 0.0
    %660 = vmatpush1.msra.mxu0 0.0
    %661 = vmatprep.mubr.f32.mxu0 0.0
    %662 = vmatmul.mubr.f32.gmra.mrb[0].mxu0 %v517
    %v663 = vpop.f32.mrb[0].mxu0
    %v664 = vadd.f32 0.0, %v663
    %v665 = vpop.f32.mrb[0].mxu0
    %666 = vmatprep.mubr.f32.mxu0 0.0
    %667 = vmatmul.mubr.f32.gmra.mrb[0].mxu0 %v520
    %v668 = vpop.f32.mrb[0].mxu0
    %v669 = vadd.f32 0.0, %v668
    %v670 = vpop.f32.mrb[0].mxu0
    %671 = vdwg.mxu0
    %v672 = vrcp.pop %v664
    %v673 = vrcp.pop %v669
    %v674 = vmul.f32 %v589, %v672
    %v675 = vmul.f32 %v594, %v673
    %v676 = vlaneseq
    %v677 = vshrl.u32 %v676, 7
    %v678 = vsub.s32 1, %v677
    %v679 = vrot.slane %v191, %v678
    %v681 = vsel %vm196, %v674, 0
    %v684 = vsel %vm196, %v675, 0
    %686 = vmatprep.subr.mxu0 0.0
    %687 = vmatpush1.msra.mxu0 %v162
    %688 = vmatprep.subr.mxu0 0.0
    %689 = vmatpush1.msra.mxu0 %v163
    %690 = vmatprep.subr.mxu0 0.0
    %691 = vmatpush1.msra.mxu0 %v164
    %692 = vmatprep.subr.mxu0 0.0
    %693 = vmatpush1.msra.mxu0 %v165
    %694 = vmatprep.subr.mxu0 0.0
    %695 = vmatpush1.msra.mxu0 0.0
    %696 = vmatprep.subr.mxu0 0.0
    %697 = vmatpush1.msra.mxu0 0.0
    %698 = vmatprep.subr.mxu0 0.0
    %699 = vmatpush1.msra.mxu0 0.0
    %700 = vmatprep.subr.mxu0 0.0
    %701 = vmatpush1.msra.mxu0 0.0
    %702 = vmatprep.subr.mxu0 0.0
    %703 = vmatpush1.msra.mxu0 0.0
    %704 = vmatprep.subr.mxu0 0.0
    %705 = vmatpush1.msra.mxu0 0.0
    %706 = vmatprep.subr.mxu0 0.0
    %707 = vmatpush1.msra.mxu0 0.0
    %708 = vmatprep.subr.mxu0 0.0
    %709 = vmatpush1.msra.mxu0 0.0
    %710 = vmatprep.subr.mxu0 0.0
    %711 = vmatpush1.msra.mxu0 0.0
    %712 = vmatprep.subr.mxu0 0.0
    %713 = vmatpush1.msra.mxu0 0.0
    %714 = vmatprep.subr.mxu0 0.0
    %715 = vmatpush1.msra.mxu0 0.0
    %716 = vmatprep.subr.mxu0 0.0
    %717 = vmatpush1.msra.mxu0 0.0
    %718 = vmatprep.subr.mxu0 0.0
    %719 = vmatpush1.msra.mxu0 0.0
    %720 = vmatprep.subr.mxu0 0.0
    %721 = vmatpush1.msra.mxu0 0.0
    %722 = vmatprep.subr.mxu0 0.0
    %723 = vmatpush1.msra.mxu0 0.0
    %724 = vmatprep.subr.mxu0 0.0
    %725 = vmatpush1.msra.mxu0 0.0
    %726 = vmatprep.subr.mxu0 0.0
    %727 = vmatpush1.msra.mxu0 0.0
    %728 = vmatprep.subr.mxu0 0.0
    %729 = vmatpush1.msra.mxu0 0.0
    %730 = vmatprep.subr.mxu0 0.0
    %731 = vmatpush1.msra.mxu0 0.0
    %732 = vmatprep.subr.mxu0 0.0
    %733 = vmatpush1.msra.mxu0 0.0
    %734 = vmatprep.subr.mxu0 0.0
    %735 = vmatpush1.msra.mxu0 0.0
    %736 = vmatprep.subr.mxu0 0.0
    %737 = vmatpush1.msra.mxu0 0.0
    %738 = vmatprep.subr.mxu0 0.0
    %739 = vmatpush1.msra.mxu0 0.0
    %740 = vmatprep.subr.mxu0 0.0
    %741 = vmatpush1.msra.mxu0 0.0
    %742 = vmatprep.subr.mxu0 0.0
    %743 = vmatpush1.msra.mxu0 0.0
    %744 = vmatprep.subr.mxu0 0.0
    %745 = vmatpush1.msra.mxu0 0.0
    %746 = vmatprep.subr.mxu0 0.0
    %747 = vmatpush1.msra.mxu0 0.0
    %748 = vmatprep.subr.mxu0 0.0
    %749 = vmatpush1.msra.mxu0 0.0
    %750 = vmatprep.mubr.f32.mxu0 0.0
    %751 = vmatmul.mubr.f32.gmra.mrb[0].mxu0 %v681
    %v752 = vpop.f32.mrb[0].mxu0
    %v753 = vadd.f32 %v679, %v752
    %v754 = vpop.f32.mrb[0].mxu0
    %755 = vmatprep.mubr.f32.mxu0 0.0
    %756 = vmatmul.mubr.f32.gmra.mrb[0].mxu0 %v684
    %v757 = vpop.f32.mrb[0].mxu0
    %v758 = vadd.f32 %v679, %v757
    %v759 = vpop.f32.mrb[0].mxu0
    %760 = vdwg.mxu0
    %v761 = vadd.f32 %v142, %v753
    %v762 = vadd.f32 %v147, %v758
    %v763 = vsel %vm196, %v761, 0.0
    %764 = vadd.xlane.f32.xlu0 %v763
    %v765 = vpop.xlane.xlu0 %764
    %v766 = vsel %vm196, %v762, 0.0
    %767 = vadd.xlane.f32.xlu0 %v766
    %v768 = vpop.xlane.xlu0 %767
    %v769 = vrcp.pop 32.0
    %v770 = vmul.f32 %v765, %v769
    %v771 = vmul.f32 %v768, %v769
    %v772 = vsub.f32 %v761, %v770
    %v773 = vsub.f32 %v762, %v771
    %v774 = vmul.f32 %v772, %v772
    %v775 = vmul.f32 %v773, %v773
    %v776 = vsel %vm196, %v774, 0.0
    %777 = vadd.xlane.f32.xlu0 %v776
    %v778 = vpop.xlane.xlu0 %777
    %v779 = vsel %vm196, %v775, 0.0
    %780 = vadd.xlane.f32.xlu0 %v779
    %v781 = vpop.xlane.xlu0 %780
    %v782 = vmul.f32 %v778, %v769
    %v783 = vmul.f32 %v781, %v769
    %v784 = vadd.f32 %v782, 1e-05
    %v785 = vadd.f32 %v783, 1e-05
    %v786 = vrsqrt.pop %v784
    %v787 = vrsqrt.pop %v785
    %v788 = vmul.f32 %v772, %v786
    %v789 = vmul.f32 %v773, %v787
    %v790 = vlaneseq
    %v791 = vshrl.u32 %v790, 7
    %v792 = vsub.s32 4, %v791
    %v793 = vrot.slane %v191, %v792
    %v794 = vmul.f32 %v788, %v793
    %v795 = vmul.f32 %v789, %v793
    %v796 = vlaneseq
    %v797 = vshrl.u32 %v796, 7
    %v798 = vsub.s32 5, %v797
    %v799 = vrot.slane %v191, %v798
    %v800 = vadd.f32 %v794, %v799
    %v801 = vadd.f32 %v795, %v799
    %v802 = vlaneseq
    %v803 = vshrl.u32 %v802, 7
    %v804 = vsub.s32 2, %v803
    %v805 = vrot.slane %v191, %v804
    %v807 = vsel %vm196, %v800, 0
    %v810 = vsel %vm196, %v801, 0
    %812 = vmatprep.subr.mxu0 0.0
    %813 = vmatpush1.msra.mxu0 %v170
    %814 = vmatprep.subr.mxu0 0.0
    %815 = vmatpush1.msra.mxu0 %v171
    %816 = vmatprep.subr.mxu0 0.0
    %817 = vmatpush1.msra.mxu0 %v172
    %818 = vmatprep.subr.mxu0 0.0
    %819 = vmatpush1.msra.mxu0 %v173
    %820 = vmatprep.subr.mxu0 0.0
    %821 = vmatpush1.msra.mxu0 0.0
    %822 = vmatprep.subr.mxu0 0.0
    %823 = vmatpush1.msra.mxu0 0.0
    %824 = vmatprep.subr.mxu0 0.0
    %825 = vmatpush1.msra.mxu0 0.0
    %826 = vmatprep.subr.mxu0 0.0
    %827 = vmatpush1.msra.mxu0 0.0
    %828 = vmatprep.subr.mxu0 0.0
    %829 = vmatpush1.msra.mxu0 0.0
    %830 = vmatprep.subr.mxu0 0.0
    %831 = vmatpush1.msra.mxu0 0.0
    %832 = vmatprep.subr.mxu0 0.0
    %833 = vmatpush1.msra.mxu0 0.0
    %834 = vmatprep.subr.mxu0 0.0
    %835 = vmatpush1.msra.mxu0 0.0
    %836 = vmatprep.subr.mxu0 0.0
    %837 = vmatpush1.msra.mxu0 0.0
    %838 = vmatprep.subr.mxu0 0.0
    %839 = vmatpush1.msra.mxu0 0.0
    %840 = vmatprep.subr.mxu0 0.0
    %841 = vmatpush1.msra.mxu0 0.0
    %842 = vmatprep.subr.mxu0 0.0
    %843 = vmatpush1.msra.mxu0 0.0
    %844 = vmatprep.subr.mxu0 0.0
    %845 = vmatpush1.msra.mxu0 0.0
    %846 = vmatprep.subr.mxu0 0.0
    %847 = vmatpush1.msra.mxu0 0.0
    %848 = vmatprep.subr.mxu0 0.0
    %849 = vmatpush1.msra.mxu0 0.0
    %850 = vmatprep.subr.mxu0 0.0
    %851 = vmatpush1.msra.mxu0 0.0
    %852 = vmatprep.subr.mxu0 0.0
    %853 = vmatpush1.msra.mxu0 0.0
    %854 = vmatprep.subr.mxu0 0.0
    %855 = vmatpush1.msra.mxu0 0.0
    %856 = vmatprep.subr.mxu0 0.0
    %857 = vmatpush1.msra.mxu0 0.0
    %858 = vmatprep.subr.mxu0 0.0
    %859 = vmatpush1.msra.mxu0 0.0
    %860 = vmatprep.subr.mxu0 0.0
    %861 = vmatpush1.msra.mxu0 0.0
    %862 = vmatprep.subr.mxu0 0.0
    %863 = vmatpush1.msra.mxu0 0.0
    %864 = vmatprep.subr.mxu0 0.0
    %865 = vmatpush1.msra.mxu0 0.0
    %866 = vmatprep.subr.mxu0 0.0
    %867 = vmatpush1.msra.mxu0 0.0
    %868 = vmatprep.subr.mxu0 0.0
    %869 = vmatpush1.msra.mxu0 0.0
    %870 = vmatprep.subr.mxu0 0.0
    %871 = vmatpush1.msra.mxu0 0.0
    %872 = vmatprep.subr.mxu0 0.0
    %873 = vmatpush1.msra.mxu0 0.0
    %874 = vmatprep.subr.mxu0 0.0
    %875 = vmatpush1.msra.mxu0 0.0
    %876 = vmatprep.mubr.f32.mxu0 0.0
    %877 = vmatmul.mubr.f32.gmra.mrb[0].mxu0 %v807
    %v878 = vpop.f32.mrb[0].mxu0
    %v879 = vadd.f32 %v805, %v878
    %v880 = vpop.f32.mrb[0].mxu0
    %881 = vmatprep.mubr.f32.mxu0 0.0
    %882 = vmatmul.mubr.f32.gmra.mrb[0].mxu0 %v810
    %v883 = vpop.f32.mrb[0].mxu0
    %v884 = vadd.f32 %v805, %v883
    %v885 = vpop.f32.mrb[0].mxu0
    %886 = vdwg.mxu0
    %v887 = vmax.f32 %v879, 0.0
    %v888 = vmax.f32 %v884, 0.0
    %v889 = vlaneseq
    %v890 = vshrl.u32 %v889, 7
    %v891 = vsub.s32 3, %v890
    %v892 = vrot.slane %v191, %v891
    %v894 = vsel %vm471, %v887, 0
    %v897 = vsel %vm471, %v888, 0
    %899 = vmatprep.subr.mxu0 0.0
    %900 = vmatpush1.msra.mxu0 %v182
    %901 = vmatprep.subr.mxu0 0.0
    %902 = vmatpush1.msra.mxu0 %v183
    %903 = vmatprep.subr.mxu0 0.0
    %904 = vmatpush1.msra.mxu0 %v184
    %905 = vmatprep.subr.mxu0 0.0
    %906 = vmatpush1.msra.mxu0 %v185
    %907 = vmatprep.subr.mxu0 0.0
    %908 = vmatpush1.msra.mxu0 %v186
    %909 = vmatprep.subr.mxu0 0.0
    %910 = vmatpush1.msra.mxu0 %v187
    %911 = vmatprep.subr.mxu0 0.0
    %912 = vmatpush1.msra.mxu0 %v188
    %913 = vmatprep.subr.mxu0 0.0
    %914 = vmatpush1.msra.mxu0 %v189
    %915 = vmatprep.subr.mxu0 0.0
    %916 = vmatpush1.msra.mxu0 0.0
    %917 = vmatprep.subr.mxu0 0.0
    %918 = vmatpush1.msra.mxu0 0.0
    %919 = vmatprep.subr.mxu0 0.0
    %920 = vmatpush1.msra.mxu0 0.0
    %921 = vmatprep.subr.mxu0 0.0
    %922 = vmatpush1.msra.mxu0 0.0
    %923 = vmatprep.subr.mxu0 0.0
    %924 = vmatpush1.msra.mxu0 0.0
    %925 = vmatprep.subr.mxu0 0.0
    %926 = vmatpush1.msra.mxu0 0.0
    %927 = vmatprep.subr.mxu0 0.0
    %928 = vmatpush1.msra.mxu0 0.0
    %929 = vmatprep.subr.mxu0 0.0
    %930 = vmatpush1.msra.mxu0 0.0
    %931 = vmatprep.subr.mxu0 0.0
    %932 = vmatpush1.msra.mxu0 0.0
    %933 = vmatprep.subr.mxu0 0.0
    %934 = vmatpush1.msra.mxu0 0.0
    %935 = vmatprep.subr.mxu0 0.0
    %936 = vmatpush1.msra.mxu0 0.0
    %937 = vmatprep.subr.mxu0 0.0
    %938 = vmatpush1.msra.mxu0 0.0
    %939 = vmatprep.subr.mxu0 0.0
    %940 = vmatpush1.msra.mxu0 0.0
    %941 = vmatprep.subr.mxu0 0.0
    %942 = vmatpush1.msra.mxu0 0.0
    %943 = vmatprep.subr.mxu0 0.0
    %944 = vmatpush1.msra.mxu0 0.0
    %945 = vmatprep.subr.mxu0 0.0
    %946 = vmatpush1.msra.mxu0 0.0
    %947 = vmatprep.subr.mxu0 0.0
    %948 = vmatpush1.msra.mxu0 0.0
    %949 = vmatprep.subr.mxu0 0.0
    %950 = vmatpush1.msra.mxu0 0.0
    %951 = vmatprep.subr.mxu0 0.0
    %952 = vmatpush1.msra.mxu0 0.0
    %953 = vmatprep.subr.mxu0 0.0
    %954 = vmatpush1.msra.mxu0 0.0
    %955 = vmatprep.subr.mxu0 0.0
    %956 = vmatpush1.msra.mxu0 0.0
    %957 = vmatprep.subr.mxu0 0.0
    %958 = vmatpush1.msra.mxu0 0.0
    %959 = vmatprep.subr.mxu0 0.0
    %960 = vmatpush1.msra.mxu0 0.0
    %961 = vmatprep.subr.mxu0 0.0
    %962 = vmatpush1.msra.mxu0 0.0
    %963 = vmatprep.mubr.f32.mxu0 0.0
    %964 = vmatmul.mubr.f32.gmra.mrb[0].mxu0 %v894
    %v965 = vpop.f32.mrb[0].mxu0
    %v966 = vadd.f32 %v892, %v965
    %v967 = vpop.f32.mrb[0].mxu0
    %968 = vmatprep.mubr.f32.mxu0 0.0
    %969 = vmatmul.mubr.f32.gmra.mrb[0].mxu0 %v897
    %v970 = vpop.f32.mrb[0].mxu0
    %v971 = vadd.f32 %v892, %v970
    %v972 = vpop.f32.mrb[0].mxu0
    %973 = vdwg.mxu0
    %v974 = vadd.f32 %v800, %v966
    %v975 = vadd.f32 %v801, %v971
    %v976 = vsel %vm196, %v974, 0.0
    %977 = vadd.xlane.f32.xlu0 %v976
    %v978 = vpop.xlane.xlu0 %977
    %v979 = vsel %vm196, %v975, 0.0
    %980 = vadd.xlane.f32.xlu0 %v979
    %v981 = vpop.xlane.xlu0 %980
    %v982 = vmul.f32 %v978, %v769
    %v983 = vmul.f32 %v981, %v769
    %v984 = vsub.f32 %v974, %v982
    %v985 = vsub.f32 %v975, %v983
    %v986 = vmul.f32 %v984, %v984
    %v987 = vmul.f32 %v985, %v985
    %v988 = vsel %vm196, %v986, 0.0
    %989 = vadd.xlane.f32.xlu0 %v988
    %v990 = vpop.xlane.xlu0 %989
    %v991 = vsel %vm196, %v987, 0.0
    %992 = vadd.xlane.f32.xlu0 %v991
    %v993 = vpop.xlane.xlu0 %992
    %v994 = vmul.f32 %v990, %v769
    %v995 = vmul.f32 %v993, %v769
    %v996 = vadd.f32 %v994, 1e-05
    %v997 = vadd.f32 %v995, 1e-05
    %v998 = vrsqrt.pop %v996
    %v999 = vrsqrt.pop %v997
    %v1000 = vmul.f32 %v984, %v998
    %v1001 = vmul.f32 %v985, %v999
    %v1002 = vlaneseq
    %v1003 = vshrl.u32 %v1002, 7
    %v1004 = vsub.s32 6, %v1003
    %v1005 = vrot.slane %v191, %v1004
    %v1006 = vmul.f32 %v1000, %v1005
    %v1007 = vmul.f32 %v1001, %v1005
    %v1008 = vlaneseq
    %v1009 = vshrl.u32 %v1008, 7
    %v1010 = vsub.s32 7, %v1009
    %v1011 = vrot.slane %v191, %v1010
    %v1012 = vadd.f32 %v1006, %v1011
    %v1013 = vadd.f32 %v1007, %v1011
    %s1014 = scalar_lea.vmem [#allocation2], 84
    %v1015 = vld [vmem:[%s1014] sm:$0xf]
    %v1016 = vld [vmem:[%s1014 + $0x4] sm:$0xf]
    %v1017 = vld [vmem:[%s1014 + $0x8] sm:$0xf]
    %v1018 = vld [vmem:[%s1014 + $0xc] sm:$0xf]
    %v1019 = vunpack.c.l.bf16 %v1015
    %v1020 = vunpack.c.l.bf16 %v1016
    %v1021 = vunpack.c.l.bf16 %v1017
    %v1022 = vunpack.c.l.bf16 %v1018
    %v1023 = vld [vmem:[%s1014 + $0x10] sm:$0xf]
    %v1024 = vld [vmem:[%s1014 + $0x14] sm:$0xf]
    %v1025 = vld [vmem:[%s1014 + $0x18] sm:$0xf]
    %v1026 = vld [vmem:[%s1014 + $0x1c] sm:$0xf]
    %v1027 = vunpack.c.l.bf16 %v1023
    %v1028 = vunpack.c.l.bf16 %v1024
    %v1029 = vunpack.c.l.bf16 %v1025
    %v1030 = vunpack.c.l.bf16 %v1026
    %v1031 = vld [vmem:[%s1014 + $0x20] sm:$0xf]
    %v1032 = vld [vmem:[%s1014 + $0x24] sm:$0xf]
    %v1033 = vld [vmem:[%s1014 + $0x28] sm:$0xf]
    %v1034 = vld [vmem:[%s1014 + $0x2c] sm:$0xf]
    %v1035 = vunpack.c.l.bf16 %v1031
    %v1036 = vunpack.c.l.bf16 %v1032
    %v1037 = vunpack.c.l.bf16 %v1033
    %v1038 = vunpack.c.l.bf16 %v1034
    %v1039 = vld [vmem:[%s1014 + $0x30] sm:$0xf]
    %v1040 = vld [vmem:[%s1014 + $0x34] sm:$0xf]
    %v1041 = vld [vmem:[%s1014 + $0x38] sm:$0xf]
    %v1042 = vld [vmem:[%s1014 + $0x3c] sm:$0xf]
    %v1043 = vld [vmem:[%s1014 + $0x40] sm:$0xf]
    %v1044 = vld [vmem:[%s1014 + $0x44] sm:$0xf]
    %v1045 = vld [vmem:[%s1014 + $0x48] sm:$0xf]
    %v1046 = vld [vmem:[%s1014 + $0x4c] sm:$0xf]
    %v1047 = vunpack.c.l.bf16 %v1039
    %v1048 = vunpack.c.l.bf16 %v1040
    %v1049 = vunpack.c.l.bf16 %v1041
    %v1050 = vunpack.c.l.bf16 %v1042
    %v1051 = vunpack.c.l.bf16 %v1043
    %v1052 = vunpack.c.l.bf16 %v1044
    %v1053 = vunpack.c.l.bf16 %v1045
    %v1054 = vunpack.c.l.bf16 %v1046
    %v1055 = vld [vmem:[%s1014 + $0x50] sm:$0xf]
    %v1056 = vunpack.c.l.bf16 %v1055
    %v1057 = vlaneseq
    %v1058 = vshrl.u32 %v1057, 7
    %v1059 = vsub.s32 0, %v1058
    %v1060 = vrot.slane %v1056, %v1059
    %v1062 = vsel %vm196, %v1012, 0
    %v1065 = vsel %vm196, %v1013, 0
    %1067 = vmatprep.subr.mxu0 0.0
    %1068 = vmatpush1.msra.mxu0 %v1019
    %1069 = vmatprep.subr.mxu0 0.0
    %1070 = vmatpush1.msra.mxu0 %v1020
    %1071 = vmatprep.subr.mxu0 0.0
    %1072 = vmatpush1.msra.mxu0 %v1021
    %1073 = vmatprep.subr.mxu0 0.0
    %1074 = vmatpush1.msra.mxu0 %v1022
    %1075 = vmatprep.subr.mxu0 0.0
    %1076 = vmatpush1.msra.mxu0 0.0
    %1077 = vmatprep.subr.mxu0 0.0
    %1078 = vmatpush1.msra.mxu0 0.0
    %1079 = vmatprep.subr.mxu0 0.0
    %1080 = vmatpush1.msra.mxu0 0.0
    %1081 = vmatprep.subr.mxu0 0.0
    %1082 = vmatpush1.msra.mxu0 0.0
    %1083 = vmatprep.subr.mxu0 0.0
    %1084 = vmatpush1.msra.mxu0 0.0
    %1085 = vmatprep.subr.mxu0 0.0
    %1086 = vmatpush1.msra.mxu0 0.0
    %1087 = vmatprep.subr.mxu0 0.0
    %1088 = vmatpush1.msra.mxu0 0.0
    %1089 = vmatprep.subr.mxu0 0.0
    %1090 = vmatpush1.msra.mxu0 0.0
    %1091 = vmatprep.subr.mxu0 0.0
    %1092 = vmatpush1.msra.mxu0 0.0
    %1093 = vmatprep.subr.mxu0 0.0
    %1094 = vmatpush1.msra.mxu0 0.0
    %1095 = vmatprep.subr.mxu0 0.0
    %1096 = vmatpush1.msra.mxu0 0.0
    %1097 = vmatprep.subr.mxu0 0.0
    %1098 = vmatpush1.msra.mxu0 0.0
    %1099 = vmatprep.subr.mxu0 0.0
    %1100 = vmatpush1.msra.mxu0 0.0
    %1101 = vmatprep.subr.mxu0 0.0
    %1102 = vmatpush1.msra.mxu0 0.0
    %1103 = vmatprep.subr.mxu0 0.0
    %1104 = vmatpush1.msra.mxu0 0.0
    %1105 = vmatprep.subr.mxu0 0.0
    %1106 = vmatpush1.msra.mxu0 0.0
    %1107 = vmatprep.subr.mxu0 0.0
    %1108 = vmatpush1.msra.mxu0 0.0
    %1109 = vmatprep.subr.mxu0 0.0
    %1110 = vmatpush1.msra.mxu0 0.0
    %1111 = vmatprep.subr.mxu0 0.0
    %1112 = vmatpush1.msra.mxu0 0.0
    %1113 = vmatprep.subr.mxu0 0.0
    %1114 = vmatpush1.msra.mxu0 0.0
    %1115 = vmatprep.subr.mxu0 0.0
    %1116 = vmatpush1.msra.mxu0 0.0
    %1117 = vmatprep.subr.mxu0 0.0
    %1118 = vmatpush1.msra.mxu0 0.0
    %1119 = vmatprep.subr.mxu0 0.0
    %1120 = vmatpush1.msra.mxu0 0.0
    %1121 = vmatprep.subr.mxu0 0.0
    %1122 = vmatpush1.msra.mxu0 0.0
    %1123 = vmatprep.subr.mxu0 0.0
    %1124 = vmatpush1.msra.mxu0 0.0
    %1125 = vmatprep.subr.mxu0 0.0
    %1126 = vmatpush1.msra.mxu0 0.0
    %1127 = vmatprep.subr.mxu0 0.0
    %1128 = vmatpush1.msra.mxu0 0.0
    %1129 = vmatprep.subr.mxu0 0.0
    %1130 = vmatpush1.msra.mxu0 0.0
    %1131 = vmatprep.mubr.f32.mxu0 0.0
    %1132 = vmatmul.mubr.f32.gmra.mrb[0].mxu0 %v1062
    %v1133 = vpop.f32.mrb[0].mxu0
    %v1134 = vadd.f32 %v1060, %v1133
    %v1135 = vpop.f32.mrb[0].mxu0
    %1136 = vmatprep.mubr.f32.mxu0 0.0
    %1137 = vmatmul.mubr.f32.gmra.mrb[0].mxu0 %v1065
    %v1138 = vpop.f32.mrb[0].mxu0
    %v1139 = vadd.f32 %v1060, %v1138
    %v1140 = vpop.f32.mrb[0].mxu0
    %1141 = vdwg.mxu0
    %v1142 = vmul.f32 %v1134, %v287
    %v1143 = vmul.f32 %v1139, %v289
    %v1144 = vmul.f32 %v1134, %v291
    %v1145 = vmul.f32 %v1139, %v293
    %v1146 = vmul.f32 %v1134, %v295
    %v1147 = vmul.f32 %v1139, %v297
    %v1148 = vmul.f32 %v1134, %v299
    %v1149 = vmul.f32 %v1139, %v301
    %v1150 = vmul.f32 %v1134, %v319
    %v1151 = vmul.f32 %v1139, %v321
    %v1152 = vmul.f32 %v1134, %v323
    %v1153 = vmul.f32 %v1139, %v325
    %v1154 = vmul.f32 %v1134, %v327
    %v1155 = vmul.f32 %v1139, %v329
    %v1156 = vmul.f32 %v1134, %v331
    %v1157 = vmul.f32 %v1139, %v333
    %1166 = vrot.lane.b32.xlu0 %v1142, 96
    %v1167 = vpop.permute.xlu0 %1166
    %1168 = vrot.lane.b32.xlu0 %v1143, 96
    %v1169 = vpop.permute.xlu0 %1168
    %1170 = vrot.lane.b32.xlu0 %v1144, 96
    %v1171 = vpop.permute.xlu0 %1170
    %1172 = vrot.lane.b32.xlu0 %v1145, 96
    %v1173 = vpop.permute.xlu0 %1172
    %1174 = vrot.lane.b32.xlu0 %v1146, 96
    %v1175 = vpop.permute.xlu0 %1174
    %1176 = vrot.lane.b32.xlu0 %v1147, 96
    %v1177 = vpop.permute.xlu0 %1176
    %1178 = vrot.lane.b32.xlu0 %v1148, 96
    %v1179 = vpop.permute.xlu0 %1178
    %1180 = vrot.lane.b32.xlu0 %v1149, 96
    %v1181 = vpop.permute.xlu0 %1180
    %v1183 = vsel %vm196, %v1134, 0
    %v1186 = vsel %vm196, %v1139, 0
    %v1188 = vsel %vm196, %v1167, 0
    %v1190 = vsel %vm196, %v1169, 0
    %v1192 = vsel %vm196, %v1171, 0
    %v1194 = vsel %vm196, %v1173, 0
    %v1196 = vsel %vm196, %v1175, 0
    %v1198 = vsel %vm196, %v1177, 0
    %v1200 = vsel %vm196, %v1179, 0
    %v1202 = vsel %vm196, %v1181, 0
    %1204 = vmatprep.subr.mxu0 0.0
    %1205 = vmatpush1.xpose.msra.mxu0 %v1188
    %1206 = vmatprep.subr.mxu0 0.0
    %1207 = vmatpush1.xpose.msra.mxu0 %v1190
    %1208 = vmatprep.subr.mxu0 0.0
    %1209 = vmatpush1.xpose.msra.mxu0 %v1192
    %1210 = vmatprep.subr.mxu0 0.0
    %1211 = vmatpush1.xpose.msra.mxu0 %v1194
    %1212 = vmatprep.subr.mxu0 0.0
    %1213 = vmatpush1.xpose.msra.mxu0 %v1196
    %1214 = vmatprep.subr.mxu0 0.0
    %1215 = vmatpush1.xpose.msra.mxu0 %v1198
    %1216 = vmatprep.subr.mxu0 0.0
    %1217 = vmatpush1.xpose.msra.mxu0 %v1200
    %1218 = vmatprep.subr.mxu0 0.0
    %1219 = vmatpush1.xpose.msra.mxu0 %v1202
    %1220 = vmatprep.subr.mxu0 0.0
    %1221 = vmatpush1.xpose.msra.mxu0 0.0
    %1222 = vmatprep.subr.mxu0 0.0
    %1223 = vmatpush1.xpose.msra.mxu0 0.0
    %1224 = vmatprep.subr.mxu0 0.0
    %1225 = vmatpush1.xpose.msra.mxu0 0.0
    %1226 = vmatprep.subr.mxu0 0.0
    %1227 = vmatpush1.xpose.msra.mxu0 0.0
    %1228 = vmatprep.subr.mxu0 0.0
    %1229 = vmatpush1.xpose.msra.mxu0 0.0
    %1230 = vmatprep.subr.mxu0 0.0
    %1231 = vmatpush1.xpose.msra.mxu0 0.0
    %1232 = vmatprep.subr.mxu0 0.0
    %1233 = vmatpush1.xpose.msra.mxu0 0.0
    %1234 = vmatprep.subr.mxu0 0.0
    %1235 = vmatpush1.xpose.msra.mxu0 0.0
    %1236 = vmatprep.subr.mxu0 0.0
    %1237 = vmatpush1.xpose.msra.mxu0 0.0
    %1238 = vmatprep.subr.mxu0 0.0
    %1239 = vmatpush1.xpose.msra.mxu0 0.0
    %1240 = vmatprep.subr.mxu0 0.0
    %1241 = vmatpush1.xpose.msra.mxu0 0.0
    %1242 = vmatprep.subr.mxu0 0.0
    %1243 = vmatpush1.xpose.msra.mxu0 0.0
    %1244 = vmatprep.subr.mxu0 0.0
    %1245 = vmatpush1.xpose.msra.mxu0 0.0
    %1246 = vmatprep.subr.mxu0 0.0
    %1247 = vmatpush1.xpose.msra.mxu0 0.0
    %1248 = vmatprep.subr.mxu0 0.0
    %1249 = vmatpush1.xpose.msra.mxu0 0.0
    %1250 = vmatprep.subr.mxu0 0.0
    %1251 = vmatpush1.xpose.msra.mxu0 0.0
    %1252 = vmatprep.subr.mxu0 0.0
    %1253 = vmatpush1.xpose.msra.mxu0 0.0
    %1254 = vmatprep.subr.mxu0 0.0
    %1255 = vmatpush1.xpose.msra.mxu0 0.0
    %1256 = vmatprep.subr.mxu0 0.0
    %1257 = vmatpush1.xpose.msra.mxu0 0.0
    %1258 = vmatprep.subr.mxu0 0.0
    %1259 = vmatpush1.xpose.msra.mxu0 0.0
    %1260 = vmatprep.subr.mxu0 0.0
    %1261 = vmatpush1.xpose.msra.mxu0 0.0
    %1262 = vmatprep.subr.mxu0 0.0
    %1263 = vmatpush1.xpose.msra.mxu0 0.0
    %1264 = vmatprep.subr.mxu0 0.0
    %1265 = vmatpush1.xpose.msra.mxu0 0.0
    %1266 = vmatprep.subr.mxu0 0.0
    %1267 = vmatpush1.xpose.msra.mxu0 0.0
    %1268 = vmatprep.mubr.f32.mxu0 0.0
    %1269 = vmatmul.mubr.f32.gmra.mrb[0].mxu0 %v1183
    %v1270 = vpop.f32.mrb[0].mxu0
    %v1271 = vadd.f32 %v60, %v1270
    %v1272 = vpop.f32.mrb[0].mxu0
    %1273 = vmatprep.mubr.f32.mxu0 0.0
    %1274 = vmatmul.mubr.f32.gmra.mrb[0].mxu0 %v1186
    %v1275 = vpop.f32.mrb[0].mxu0
    %v1276 = vadd.f32 %v61, %v1275
    %v1277 = vpop.f32.mrb[0].mxu0
    %1278 = vdwg.mxu0
    %v1279 = vsel %vm471, %v1271, -inf
    %1280 = vmax.xlane.f32.xlu0 %v1279
    %v1281 = vpop.xlane.xlu0 %1280
    %v1282 = vsel %vm471, %v1276, -inf
    %1283 = vmax.xlane.f32.xlu0 %v1282
    %v1284 = vpop.xlane.xlu0 %1283
    %v1285 = vsub.f32 %v1271, %v1281
    %v1286 = vsub.f32 %v1276, %v1284
    %v1287 = vmul.f32 %v1285, 1.442695
    %v1288 = vpow.pop %v1287
    %v1289 = vmul.f32 %v1286, 1.442695
    %v1290 = vpow.pop %v1289
    %1299 = vrot.lane.b32.xlu0 %v1150, 64
    %v1300 = vpop.permute.xlu0 %1299
    %1301 = vrot.lane.b32.xlu0 %v1151, 64
    %v1302 = vpop.permute.xlu0 %1301
    %1303 = vrot.lane.b32.xlu0 %v1152, 64
    %v1304 = vpop.permute.xlu0 %1303
    %1305 = vrot.lane.b32.xlu0 %v1153, 64
    %v1306 = vpop.permute.xlu0 %1305
    %1307 = vrot.lane.b32.xlu0 %v1154, 64
    %v1308 = vpop.permute.xlu0 %1307
    %1309 = vrot.lane.b32.xlu0 %v1155, 64
    %v1310 = vpop.permute.xlu0 %1309
    %1311 = vrot.lane.b32.xlu0 %v1156, 64
    %v1312 = vpop.permute.xlu0 %1311
    %1313 = vrot.lane.b32.xlu0 %v1157, 64
    %v1314 = vpop.permute.xlu0 %1313
    %v1324 = vsel %vm471, %v1288, 0
    %v1327 = vsel %vm471, %v1290, 0
    %1329 = vmatprep.subr.mxu0 0.0
    %1330 = vmatpush1.msra.mxu0 %v1300
    %1331 = vmatprep.subr.mxu0 0.0
    %1332 = vmatpush1.msra.mxu0 %v1302
    %1333 = vmatprep.subr.mxu0 0.0
    %1334 = vmatpush1.msra.mxu0 %v1304
    %1335 = vmatprep.subr.mxu0 0.0
    %1336 = vmatpush1.msra.mxu0 %v1306
    %1337 = vmatprep.subr.mxu0 0.0
    %1338 = vmatpush1.msra.mxu0 %v1308
    %1339 = vmatprep.subr.mxu0 0.0
    %1340 = vmatpush1.msra.mxu0 %v1310
    %1341 = vmatprep.subr.mxu0 0.0
    %1342 = vmatpush1.msra.mxu0 %v1312
    %1343 = vmatprep.subr.mxu0 0.0
    %1344 = vmatpush1.msra.mxu0 %v1314
    %1345 = vmatprep.subr.mxu0 0.0
    %1346 = vmatpush1.msra.mxu0 0.0
    %1347 = vmatprep.subr.mxu0 0.0
    %1348 = vmatpush1.msra.mxu0 0.0
    %1349 = vmatprep.subr.mxu0 0.0
    %1350 = vmatpush1.msra.mxu0 0.0
    %1351 = vmatprep.subr.mxu0 0.0
    %1352 = vmatpush1.msra.mxu0 0.0
    %1353 = vmatprep.subr.mxu0 0.0
    %1354 = vmatpush1.msra.mxu0 0.0
    %1355 = vmatprep.subr.mxu0 0.0
    %1356 = vmatpush1.msra.mxu0 0.0
    %1357 = vmatprep.subr.mxu0 0.0
    %1358 = vmatpush1.msra.mxu0 0.0
    %1359 = vmatprep.subr.mxu0 0.0
    %1360 = vmatpush1.msra.mxu0 0.0
    %1361 = vmatprep.subr.mxu0 0.0
    %1362 = vmatpush1.msra.mxu0 0.0
    %1363 = vmatprep.subr.mxu0 0.0
    %1364 = vmatpush1.msra.mxu0 0.0
    %1365 = vmatprep.subr.mxu0 0.0
    %1366 = vmatpush1.msra.mxu0 0.0
    %1367 = vmatprep.subr.mxu0 0.0
    %1368 = vmatpush1.msra.mxu0 0.0
    %1369 = vmatprep.subr.mxu0 0.0
    %1370 = vmatpush1.msra.mxu0 0.0
    %1371 = vmatprep.subr.mxu0 0.0
    %1372 = vmatpush1.msra.mxu0 0.0
    %1373 = vmatprep.subr.mxu0 0.0
    %1374 = vmatpush1.msra.mxu0 0.0
    %1375 = vmatprep.subr.mxu0 0.0
    %1376 = vmatpush1.msra.mxu0 0.0
    %1377 = vmatprep.subr.mxu0 0.0
    %1378 = vmatpush1.msra.mxu0 0.0
    %1379 = vmatprep.subr.mxu0 0.0
    %1380 = vmatpush1.msra.mxu0 0.0
    %1381 = vmatprep.subr.mxu0 0.0
    %1382 = vmatpush1.msra.mxu0 0.0
    %1383 = vmatprep.subr.mxu0 0.0
    %1384 = vmatpush1.msra.mxu0 0.0
    %1385 = vmatprep.subr.mxu0 0.0
    %1386 = vmatpush1.msra.mxu0 0.0
    %1387 = vmatprep.subr.mxu0 0.0
    %1388 = vmatpush1.msra.mxu0 0.0
    %1389 = vmatprep.subr.mxu0 0.0
    %1390 = vmatpush1.msra.mxu0 0.0
    %1391 = vmatprep.subr.mxu0 0.0
    %1392 = vmatpush1.msra.mxu0 0.0
    %1393 = vmatprep.mubr.f32.mxu0 0.0
    %1394 = vmatmul.mubr.f32.gmra.mrb[0].mxu0 %v1324
    %v1395 = vpop.f32.mrb[0].mxu0
    %v1396 = vadd.f32 0.0, %v1395
    %v1397 = vpop.f32.mrb[0].mxu0
    %1398 = vmatprep.mubr.f32.mxu0 0.0
    %1399 = vmatmul.mubr.f32.gmra.mrb[0].mxu0 %v1327
    %v1400 = vpop.f32.mrb[0].mxu0
    %v1401 = vadd.f32 0.0, %v1400
    %v1402 = vpop.f32.mrb[0].mxu0
    %1403 = vdwg.mxu0
    %1404 = vmatprep.subr.mxu0 0.0
    %1405 = vmatpush1.msra.mxu0 %v50
    %1406 = vmatprep.subr.mxu0 0.0
    %1407 = vmatpush1.msra.mxu0 %v51
    %1408 = vmatprep.subr.mxu0 0.0
    %1409 = vmatpush1.msra.mxu0 %v52
    %1410 = vmatprep.subr.mxu0 0.0
    %1411 = vmatpush1.msra.mxu0 %v53
    %1412 = vmatprep.subr.mxu0 0.0
    %1413 = vmatpush1.msra.mxu0 %v54
    %1414 = vmatprep.subr.mxu0 0.0
    %1415 = vmatpush1.msra.mxu0 %v55
    %1416 = vmatprep.subr.mxu0 0.0
    %1417 = vmatpush1.msra.mxu0 %v56
    %1418 = vmatprep.subr.mxu0 0.0
    %1419 = vmatpush1.msra.mxu0 %v57
    %1420 = vmatprep.subr.mxu0 0.0
    %1421 = vmatpush1.msra.mxu0 0.0
    %1422 = vmatprep.subr.mxu0 0.0
    %1423 = vmatpush1.msra.mxu0 0.0
    %1424 = vmatprep.subr.mxu0 0.0
    %1425 = vmatpush1.msra.mxu0 0.0
    %1426 = vmatprep.subr.mxu0 0.0
    %1427 = vmatpush1.msra.mxu0 0.0
    %1428 = vmatprep.subr.mxu0 0.0
    %1429 = vmatpush1.msra.mxu0 0.0
    %1430 = vmatprep.subr.mxu0 0.0
    %1431 = vmatpush1.msra.mxu0 0.0
    %1432 = vmatprep.subr.mxu0 0.0
    %1433 = vmatpush1.msra.mxu0 0.0
    %1434 = vmatprep.subr.mxu0 0.0
    %1435 = vmatpush1.msra.mxu0 0.0
    %1436 = vmatprep.subr.mxu0 0.0
    %1437 = vmatpush1.msra.mxu0 0.0
    %1438 = vmatprep.subr.mxu0 0.0
    %1439 = vmatpush1.msra.mxu0 0.0
    %1440 = vmatprep.subr.mxu0 0.0
    %1441 = vmatpush1.msra.mxu0 0.0
    %1442 = vmatprep.subr.mxu0 0.0
    %1443 = vmatpush1.msra.mxu0 0.0
    %1444 = vmatprep.subr.mxu0 0.0
    %1445 = vmatpush1.msra.mxu0 0.0
    %1446 = vmatprep.subr.mxu0 0.0
    %1447 = vmatpush1.msra.mxu0 0.0
    %1448 = vmatprep.subr.mxu0 0.0
    %1449 = vmatpush1.msra.mxu0 0.0
    %1450 = vmatprep.subr.mxu0 0.0
    %1451 = vmatpush1.msra.mxu0 0.0
    %1452 = vmatprep.subr.mxu0 0.0
    %1453 = vmatpush1.msra.mxu0 0.0
    %1454 = vmatprep.subr.mxu0 0.0
    %1455 = vmatpush1.msra.mxu0 0.0
    %1456 = vmatprep.subr.mxu0 0.0
    %1457 = vmatpush1.msra.mxu0 0.0
    %1458 = vmatprep.subr.mxu0 0.0
    %1459 = vmatpush1.msra.mxu0 0.0
    %1460 = vmatprep.subr.mxu0 0.0
    %1461 = vmatpush1.msra.mxu0 0.0
    %1462 = vmatprep.subr.mxu0 0.0
    %1463 = vmatpush1.msra.mxu0 0.0
    %1464 = vmatprep.subr.mxu0 0.0
    %1465 = vmatpush1.msra.mxu0 0.0
    %1466 = vmatprep.subr.mxu0 0.0
    %1467 = vmatpush1.msra.mxu0 0.0
    %1468 = vmatprep.mubr.f32.mxu0 0.0
    %1469 = vmatmul.mubr.f32.gmra.mrb[0].mxu0 %v1324
    %v1470 = vpop.f32.mrb[0].mxu0
    %v1471 = vadd.f32 0.0, %v1470
    %v1472 = vpop.f32.mrb[0].mxu0
    %1473 = vmatprep.mubr.f32.mxu0 0.0
    %1474 = vmatmul.mubr.f32.gmra.mrb[0].mxu0 %v1327
    %v1475 = vpop.f32.mrb[0].mxu0
    %v1476 = vadd.f32 0.0, %v1475
    %v1477 = vpop.f32.mrb[0].mxu0
    %1478 = vdwg.mxu0
    %v1479 = vrcp.pop %v1471
    %v1480 = vrcp.pop %v1476
    %v1481 = vmul.f32 %v1396, %v1479
    %v1482 = vmul.f32 %v1401, %v1480
    %v1483 = vlaneseq
    %v1484 = vshrl.u32 %v1483, 7
    %v1485 = vsub.s32 1, %v1484
    %v1486 = vrot.slane %v1056, %v1485
    %v1488 = vsel %vm196, %v1481, 0
    %v1491 = vsel %vm196, %v1482, 0
    %1493 = vmatprep.subr.mxu0 0.0
    %1494 = vmatpush1.msra.mxu0 %v1027
    %1495 = vmatprep.subr.mxu0 0.0
    %1496 = vmatpush1.msra.mxu0 %v1028
    %1497 = vmatprep.subr.mxu0 0.0
    %1498 = vmatpush1.msra.mxu0 %v1029
    %1499 = vmatprep.subr.mxu0 0.0
    %1500 = vmatpush1.msra.mxu0 %v1030
    %1501 = vmatprep.subr.mxu0 0.0
    %1502 = vmatpush1.msra.mxu0 0.0
    %1503 = vmatprep.subr.mxu0 0.0
    %1504 = vmatpush1.msra.mxu0 0.0
    %1505 = vmatprep.subr.mxu0 0.0
    %1506 = vmatpush1.msra.mxu0 0.0
    %1507 = vmatprep.subr.mxu0 0.0
    %1508 = vmatpush1.msra.mxu0 0.0
    %1509 = vmatprep.subr.mxu0 0.0
    %1510 = vmatpush1.msra.mxu0 0.0
    %1511 = vmatprep.subr.mxu0 0.0
    %1512 = vmatpush1.msra.mxu0 0.0
    %1513 = vmatprep.subr.mxu0 0.0
    %1514 = vmatpush1.msra.mxu0 0.0
    %1515 = vmatprep.subr.mxu0 0.0
    %1516 = vmatpush1.msra.mxu0 0.0
    %1517 = vmatprep.subr.mxu0 0.0
    %1518 = vmatpush1.msra.mxu0 0.0
    %1519 = vmatprep.subr.mxu0 0.0
    %1520 = vmatpush1.msra.mxu0 0.0
    %1521 = vmatprep.subr.mxu0 0.0
    %1522 = vmatpush1.msra.mxu0 0.0
    %1523 = vmatprep.subr.mxu0 0.0
    %1524 = vmatpush1.msra.mxu0 0.0
    %1525 = vmatprep.subr.mxu0 0.0
    %1526 = vmatpush1.msra.mxu0 0.0
    %1527 = vmatprep.subr.mxu0 0.0
    %1528 = vmatpush1.msra.mxu0 0.0
    %1529 = vmatprep.subr.mxu0 0.0
    %1530 = vmatpush1.msra.mxu0 0.0
    %1531 = vmatprep.subr.mxu0 0.0
    %1532 = vmatpush1.msra.mxu0 0.0
    %1533 = vmatprep.subr.mxu0 0.0
    %1534 = vmatpush1.msra.mxu0 0.0
    %1535 = vmatprep.subr.mxu0 0.0
    %1536 = vmatpush1.msra.mxu0 0.0
    %1537 = vmatprep.subr.mxu0 0.0
    %1538 = vmatpush1.msra.mxu0 0.0
    %1539 = vmatprep.subr.mxu0 0.0
    %1540 = vmatpush1.msra.mxu0 0.0
    %1541 = vmatprep.subr.mxu0 0.0
    %1542 = vmatpush1.msra.mxu0 0.0
    %1543 = vmatprep.subr.mxu0 0.0
    %1544 = vmatpush1.msra.mxu0 0.0
    %1545 = vmatprep.subr.mxu0 0.0
    %1546 = vmatpush1.msra.mxu0 0.0
    %1547 = vmatprep.subr.mxu0 0.0
    %1548 = vmatpush1.msra.mxu0 0.0
    %1549 = vmatprep.subr.mxu0 0.0
    %1550 = vmatpush1.msra.mxu0 0.0
    %1551 = vmatprep.subr.mxu0 0.0
    %1552 = vmatpush1.msra.mxu0 0.0
    %1553 = vmatprep.subr.mxu0 0.0
    %1554 = vmatpush1.msra.mxu0 0.0
    %1555 = vmatprep.subr.mxu0 0.0
    %1556 = vmatpush1.msra.mxu0 0.0
    %1557 = vmatprep.mubr.f32.mxu0 0.0
    %1558 = vmatmul.mubr.f32.gmra.mrb[0].mxu0 %v1488
    %v1559 = vpop.f32.mrb[0].mxu0
    %v1560 = vadd.f32 %v1486, %v1559
    %v1561 = vpop.f32.mrb[0].mxu0
    %1562 = vmatprep.mubr.f32.mxu0 0.0
    %1563 = vmatmul.mubr.f32.gmra.mrb[0].mxu0 %v1491
    %v1564 = vpop.f32.mrb[0].mxu0
    %v1565 = vadd.f32 %v1486, %v1564
    %v1566 = vpop.f32.mrb[0].mxu0
    %1567 = vdwg.mxu0
    %v1568 = vadd.f32 %v1012, %v1560
    %v1569 = vadd.f32 %v1013, %v1565
    %v1570 = vsel %vm196, %v1568, 0.0
    %1571 = vadd.xlane.f32.xlu0 %v1570
    %v1572 = vpop.xlane.xlu0 %1571
    %v1573 = vsel %vm196, %v1569, 0.0
    %1574 = vadd.xlane.f32.xlu0 %v1573
    %v1575 = vpop.xlane.xlu0 %1574
    %v1576 = vmul.f32 %v1572, %v769
    %v1577 = vmul.f32 %v1575, %v769
    %v1578 = vsub.f32 %v1568, %v1576
    %v1579 = vsub.f32 %v1569, %v1577
    %v1580 = vmul.f32 %v1578, %v1578
    %v1581 = vmul.f32 %v1579, %v1579
    %v1582 = vsel %vm196, %v1580, 0.0
    %1583 = vadd.xlane.f32.xlu0 %v1582
    %v1584 = vpop.xlane.xlu0 %1583
    %v1585 = vsel %vm196, %v1581, 0.0
    %1586 = vadd.xlane.f32.xlu0 %v1585
    %v1587 = vpop.xlane.xlu0 %1586
    %v1588 = vmul.f32 %v1584, %v769
    %v1589 = vmul.f32 %v1587, %v769
    %v1590 = vadd.f32 %v1588, 1e-05
    %v1591 = vadd.f32 %v1589, 1e-05
    %v1592 = vrsqrt.pop %v1590
    %v1593 = vrsqrt.pop %v1591
    %v1594 = vmul.f32 %v1578, %v1592
    %v1595 = vmul.f32 %v1579, %v1593
    %v1596 = vlaneseq
    %v1597 = vshrl.u32 %v1596, 7
    %v1598 = vsub.s32 4, %v1597
    %v1599 = vrot.slane %v1056, %v1598
    %v1600 = vmul.f32 %v1594, %v1599
    %v1601 = vmul.f32 %v1595, %v1599
    %v1602 = vlaneseq
    %v1603 = vshrl.u32 %v1602, 7
    %v1604 = vsub.s32 5, %v1603
    %v1605 = vrot.slane %v1056, %v1604
    %v1606 = vadd.f32 %v1600, %v1605
    %v1607 = vadd.f32 %v1601, %v1605
    %v1608 = vlaneseq
    %v1609 = vshrl.u32 %v1608, 7
    %v1610 = vsub.s32 2, %v1609
    %v1611 = vrot.slane %v1056, %v1610
    %v1613 = vsel %vm196, %v1606, 0
    %v1616 = vsel %vm196, %v1607, 0
    %1618 = vmatprep.subr.mxu0 0.0
    %1619 = vmatpush1.msra.mxu0 %v1035
    %1620 = vmatprep.subr.mxu0 0.0
    %1621 = vmatpush1.msra.mxu0 %v1036
    %1622 = vmatprep.subr.mxu0 0.0
    %1623 = vmatpush1.msra.mxu0 %v1037
    %1624 = vmatprep.subr.mxu0 0.0
    %1625 = vmatpush1.msra.mxu0 %v1038
    %1626 = vmatprep.subr.mxu0 0.0
    %1627 = vmatpush1.msra.mxu0 0.0
    %1628 = vmatprep.subr.mxu0 0.0
    %1629 = vmatpush1.msra.mxu0 0.0
    %1630 = vmatprep.subr.mxu0 0.0
    %1631 = vmatpush1.msra.mxu0 0.0
    %1632 = vmatprep.subr.mxu0 0.0
    %1633 = vmatpush1.msra.mxu0 0.0
    %1634 = vmatprep.subr.mxu0 0.0
    %1635 = vmatpush1.msra.mxu0 0.0
    %1636 = vmatprep.subr.mxu0 0.0
    %1637 = vmatpush1.msra.mxu0 0.0
    %1638 = vmatprep.subr.mxu0 0.0
    %1639 = vmatpush1.msra.mxu0 0.0
    %1640 = vmatprep.subr.mxu0 0.0
    %1641 = vmatpush1.msra.mxu0 0.0
    %1642 = vmatprep.subr.mxu0 0.0
    %1643 = vmatpush1.msra.mxu0 0.0
    %1644 = vmatprep.subr.mxu0 0.0
    %1645 = vmatpush1.msra.mxu0 0.0
    %1646 = vmatprep.subr.mxu0 0.0
    %1647 = vmatpush1.msra.mxu0 0.0
    %1648 = vmatprep.subr.mxu0 0.0
    %1649 = vmatpush1.msra.mxu0 0.0
    %1650 = vmatprep.subr.mxu0 0.0
    %1651 = vmatpush1.msra.mxu0 0.0
    %1652 = vmatprep.subr.mxu0 0.0
    %1653 = vmatpush1.msra.mxu0 0.0
    %1654 = vmatprep.subr.mxu0 0.0
    %1655 = vmatpush1.msra.mxu0 0.0
    %1656 = vmatprep.subr.mxu0 0.0
    %1657 = vmatpush1.msra.mxu0 0.0
    %1658 = vmatprep.subr.mxu0 0.0
    %1659 = vmatpush1.msra.mxu0 0.0
    %1660 = vmatprep.subr.mxu0 0.0
    %1661 = vmatpush1.msra.mxu0 0.0
    %1662 = vmatprep.subr.mxu0 0.0
    %1663 = vmatpush1.msra.mxu0 0.0
    %1664 = vmatprep.subr.mxu0 0.0
    %1665 = vmatpush1.msra.mxu0 0.0
    %1666 = vmatprep.subr.mxu0 0.0
    %1667 = vmatpush1.msra.mxu0 0.0
    %1668 = vmatprep.subr.mxu0 0.0
    %1669 = vmatpush1.msra.mxu0 0.0
    %1670 = vmatprep.subr.mxu0 0.0
    %1671 = vmatpush1.msra.mxu0 0.0
    %1672 = vmatprep.subr.mxu0 0.0
    %1673 = vmatpush1.msra.mxu0 0.0
    %1674 = vmatprep.subr.mxu0 0.0
    %1675 = vmatpush1.msra.mxu0 0.0
    %1676 = vmatprep.subr.mxu0 0.0
    %1677 = vmatpush1.msra.mxu0 0.0
    %1678 = vmatprep.subr.mxu0 0.0
    %1679 = vmatpush1.msra.mxu0 0.0
    %1680 = vmatprep.subr.mxu0 0.0
    %1681 = vmatpush1.msra.mxu0 0.0
    %1682 = vmatprep.mubr.f32.mxu0 0.0
    %1683 = vmatmul.mubr.f32.gmra.mrb[0].mxu0 %v1613
    %v1684 = vpop.f32.mrb[0].mxu0
    %v1685 = vadd.f32 %v1611, %v1684
    %v1686 = vpop.f32.mrb[0].mxu0
    %1687 = vmatprep.mubr.f32.mxu0 0.0
    %1688 = vmatmul.mubr.f32.gmra.mrb[0].mxu0 %v1616
    %v1689 = vpop.f32.mrb[0].mxu0
    %v1690 = vadd.f32 %v1611, %v1689
    %v1691 = vpop.f32.mrb[0].mxu0
    %1692 = vdwg.mxu0
    %v1693 = vmax.f32 %v1685, 0.0
    %v1694 = vmax.f32 %v1690, 0.0
    %v1695 = vlaneseq
    %v1696 = vshrl.u32 %v1695, 7
    %v1697 = vsub.s32 3, %v1696
    %v1698 = vrot.slane %v1056, %v1697
    %v1700 = vsel %vm471, %v1693, 0
    %v1703 = vsel %vm471, %v1694, 0
    %1705 = vmatprep.subr.mxu0 0.0
    %1706 = vmatpush1.msra.mxu0 %v1047
    %1707 = vmatprep.subr.mxu0 0.0
    %1708 = vmatpush1.msra.mxu0 %v1048
    %1709 = vmatprep.subr.mxu0 0.0
    %1710 = vmatpush1.msra.mxu0 %v1049
    %1711 = vmatprep.subr.mxu0 0.0
    %1712 = vmatpush1.msra.mxu0 %v1050
    %1713 = vmatprep.subr.mxu0 0.0
    %1714 = vmatpush1.msra.mxu0 %v1051
    %1715 = vmatprep.subr.mxu0 0.0
    %1716 = vmatpush1.msra.mxu0 %v1052
    %1717 = vmatprep.subr.mxu0 0.0
    %1718 = vmatpush1.msra.mxu0 %v1053
    %1719 = vmatprep.subr.mxu0 0.0
    %1720 = vmatpush1.msra.mxu0 %v1054
    %1721 = vmatprep.subr.mxu0 0.0
    %1722 = vmatpush1.msra.mxu0 0.0
    %1723 = vmatprep.subr.mxu0 0.0
    %1724 = vmatpush1.msra.mxu0 0.0
    %1725 = vmatprep.subr.mxu0 0.0
    %1726 = vmatpush1.msra.mxu0 0.0
    %1727 = vmatprep.subr.mxu0 0.0
    %1728 = vmatpush1.msra.mxu0 0.0
    %1729 = vmatprep.subr.mxu0 0.0
    %1730 = vmatpush1.msra.mxu0 0.0
    %1731 = vmatprep.subr.mxu0 0.0
    %1732 = vmatpush1.msra.mxu0 0.0
    %1733 = vmatprep.subr.mxu0 0.0
    %1734 = vmatpush1.msra.mxu0 0.0
    %1735 = vmatprep.subr.mxu0 0.0
    %1736 = vmatpush1.msra.mxu0 0.0
    %1737 = vmatprep.subr.mxu0 0.0
    %1738 = vmatpush1.msra.mxu0 0.0
    %1739 = vmatprep.subr.mxu0 0.0
    %1740 = vmatpush1.msra.mxu0 0.0
    %1741 = vmatprep.subr.mxu0 0.0
    %1742 = vmatpush1.msra.mxu0 0.0
    %1743 = vmatprep.subr.mxu0 0.0
    %1744 = vmatpush1.msra.mxu0 0.0
    %1745 = vmatprep.subr.mxu0 0.0
    %1746 = vmatpush1.msra.mxu0 0.0
    %1747 = vmatprep.subr.mxu0 0.0
    %1748 = vmatpush1.msra.mxu0 0.0
    %1749 = vmatprep.subr.mxu0 0.0
    %1750 = vmatpush1.msra.mxu0 0.0
    %1751 = vmatprep.subr.mxu0 0.0
    %1752 = vmatpush1.msra.mxu0 0.0
    %1753 = vmatprep.subr.mxu0 0.0
    %1754 = vmatpush1.msra.mxu0 0.0
    %1755 = vmatprep.subr.mxu0 0.0
    %1756 = vmatpush1.msra.mxu0 0.0
    %1757 = vmatprep.subr.mxu0 0.0
    %1758 = vmatpush1.msra.mxu0 0.0
    %1759 = vmatprep.subr.mxu0 0.0
    %1760 = vmatpush1.msra.mxu0 0.0
    %1761 = vmatprep.subr.mxu0 0.0
    %1762 = vmatpush1.msra.mxu0 0.0
    %1763 = vmatprep.subr.mxu0 0.0
    %1764 = vmatpush1.msra.mxu0 0.0
    %1765 = vmatprep.subr.mxu0 0.0
    %1766 = vmatpush1.msra.mxu0 0.0
    %1767 = vmatprep.subr.mxu0 0.0
    %1768 = vmatpush1.msra.mxu0 0.0
    %1769 = vmatprep.mubr.f32.mxu0 0.0
    %1770 = vmatmul.mubr.f32.gmra.mrb[0].mxu0 %v1700
    %v1771 = vpop.f32.mrb[0].mxu0
    %v1772 = vadd.f32 %v1698, %v1771
    %v1773 = vpop.f32.mrb[0].mxu0
    %1774 = vmatprep.mubr.f32.mxu0 0.0
    %1775 = vmatmul.mubr.f32.gmra.mrb[0].mxu0 %v1703
    %v1776 = vpop.f32.mrb[0].mxu0
    %v1777 = vadd.f32 %v1698, %v1776
    %v1778 = vpop.f32.mrb[0].mxu0
    %1779 = vdwg.mxu0
    %v1780 = vadd.f32 %v1606, %v1772
    %v1781 = vadd.f32 %v1607, %v1777
    %v1782 = vsel %vm196, %v1780, 0.0
    %1783 = vadd.xlane.f32.xlu0 %v1782
    %v1784 = vpop.xlane.xlu0 %1783
    %v1785 = vsel %vm196, %v1781, 0.0
    %1786 = vadd.xlane.f32.xlu0 %v1785
    %v1787 = vpop.xlane.xlu0 %1786
    %v1788 = vmul.f32 %v1784, %v769
    %v1789 = vmul.f32 %v1787, %v769
    %v1790 = vsub.f32 %v1780, %v1788
    %v1791 = vsub.f32 %v1781, %v1789
    %v1792 = vmul.f32 %v1790, %v1790
    %v1793 = vmul.f32 %v1791, %v1791
    %v1794 = vsel %vm196, %v1792, 0.0
    %1795 = vadd.xlane.f32.xlu0 %v1794
    %v1796 = vpop.xlane.xlu0 %1795
    %v1797 = vsel %vm196, %v1793, 0.0
    %1798 = vadd.xlane.f32.xlu0 %v1797
    %v1799 = vpop.xlane.xlu0 %1798
    %v1800 = vmul.f32 %v1796, %v769
    %v1801 = vmul.f32 %v1799, %v769
    %v1802 = vadd.f32 %v1800, 1e-05
    %v1803 = vadd.f32 %v1801, 1e-05
    %v1804 = vrsqrt.pop %v1802
    %v1805 = vrsqrt.pop %v1803
    %v1806 = vmul.f32 %v1790, %v1804
    %v1807 = vmul.f32 %v1791, %v1805
    %v1808 = vlaneseq
    %v1809 = vshrl.u32 %v1808, 7
    %v1810 = vsub.s32 6, %v1809
    %v1811 = vrot.slane %v1056, %v1810
    %v1812 = vmul.f32 %v1806, %v1811
    %v1813 = vmul.f32 %v1807, %v1811
    %v1814 = vlaneseq
    %v1815 = vshrl.u32 %v1814, 7
    %v1816 = vsub.s32 7, %v1815
    %v1817 = vrot.slane %v1056, %v1816
    %v1818 = vadd.f32 %v1812, %v1817
    %v1819 = vadd.f32 %v1813, %v1817
    %v1820 = vld [vmem:[#allocation4 + $0x8] sm:$0xf]
    %v1821 = vld [vmem:[#allocation4 + $0xc] sm:$0xf]
    %v1822 = vld [vmem:[#allocation4 + $0x10] sm:$0xf]
    %v1823 = vld [vmem:[#allocation4 + $0x14] sm:$0xf]
    %v1824 = vunpack.c.l.bf16 %v1820
    %v1825 = vunpack.c.l.bf16 %v1821
    %v1826 = vunpack.c.l.bf16 %v1822
    %v1827 = vunpack.c.l.bf16 %v1823
    %v1828 = vld [vmem:[#allocation4 + $0x18] sm:$0xf]
    %v1829 = vld [vmem:[#allocation4 + $0x1c] sm:$0xf]
    %v1830 = vld [vmem:[#allocation4 + $0x20] sm:$0xf]
    %v1831 = vld [vmem:[#allocation4 + $0x24] sm:$0xf]
    %v1832 = vunpack.c.l.bf16 %v1828
    %v1833 = vunpack.c.l.bf16 %v1829
    %v1834 = vunpack.c.l.bf16 %v1830
    %v1835 = vunpack.c.l.bf16 %v1831
    %v1836 = vld [vmem:[#allocation4 + $0x28] sm:$0x1]
    %v1837 = vunpack.c.l.bf16 %v1836
    %v1838 = vlaneseq
    %v1839 = vshrl.u32 %v1838, 7
    %v1840 = vsub.s32 0, %v1839
    %v1841 = vrot.slane %v1837, %v1840
    %v1843 = vsel %vm196, %v1818, 0
    %v1846 = vsel %vm196, %v1819, 0
    %1848 = vmatprep.subr.mxu0 0.0
    %1849 = vmatpush1.msra.mxu0 %v1824
    %1850 = vmatprep.subr.mxu0 0.0
    %1851 = vmatpush1.msra.mxu0 %v1825
    %1852 = vmatprep.subr.mxu0 0.0
    %1853 = vmatpush1.msra.mxu0 %v1826
    %1854 = vmatprep.subr.mxu0 0.0
    %1855 = vmatpush1.msra.mxu0 %v1827
    %1856 = vmatprep.subr.mxu0 0.0
    %1857 = vmatpush1.msra.mxu0 0.0
    %1858 = vmatprep.subr.mxu0 0.0
    %1859 = vmatpush1.msra.mxu0 0.0
    %1860 = vmatprep.subr.mxu0 0.0
    %1861 = vmatpush1.msra.mxu0 0.0
    %1862 = vmatprep.subr.mxu0 0.0
    %1863 = vmatpush1.msra.mxu0 0.0
    %1864 = vmatprep.subr.mxu0 0.0
    %1865 = vmatpush1.msra.mxu0 0.0
    %1866 = vmatprep.subr.mxu0 0.0
    %1867 = vmatpush1.msra.mxu0 0.0
    %1868 = vmatprep.subr.mxu0 0.0
    %1869 = vmatpush1.msra.mxu0 0.0
    %1870 = vmatprep.subr.mxu0 0.0
    %1871 = vmatpush1.msra.mxu0 0.0
    %1872 = vmatprep.subr.mxu0 0.0
    %1873 = vmatpush1.msra.mxu0 0.0
    %1874 = vmatprep.subr.mxu0 0.0
    %1875 = vmatpush1.msra.mxu0 0.0
    %1876 = vmatprep.subr.mxu0 0.0
    %1877 = vmatpush1.msra.mxu0 0.0
    %1878 = vmatprep.subr.mxu0 0.0
    %1879 = vmatpush1.msra.mxu0 0.0
    %1880 = vmatprep.subr.mxu0 0.0
    %1881 = vmatpush1.msra.mxu0 0.0
    %1882 = vmatprep.subr.mxu0 0.0
    %1883 = vmatpush1.msra.mxu0 0.0
    %1884 = vmatprep.subr.mxu0 0.0
    %1885 = vmatpush1.msra.mxu0 0.0
    %1886 = vmatprep.subr.mxu0 0.0
    %1887 = vmatpush1.msra.mxu0 0.0
    %1888 = vmatprep.subr.mxu0 0.0
    %1889 = vmatpush1.msra.mxu0 0.0
    %1890 = vmatprep.subr.mxu0 0.0
    %1891 = vmatpush1.msra.mxu0 0.0
    %1892 = vmatprep.subr.mxu0 0.0
    %1893 = vmatpush1.msra.mxu0 0.0
    %1894 = vmatprep.subr.mxu0 0.0
    %1895 = vmatpush1.msra.mxu0 0.0
    %1896 = vmatprep.subr.mxu0 0.0
    %1897 = vmatpush1.msra.mxu0 0.0
    %1898 = vmatprep.subr.mxu0 0.0
    %1899 = vmatpush1.msra.mxu0 0.0
    %1900 = vmatprep.subr.mxu0 0.0
    %1901 = vmatpush1.msra.mxu0 0.0
    %1902 = vmatprep.subr.mxu0 0.0
    %1903 = vmatpush1.msra.mxu0 0.0
    %1904 = vmatprep.subr.mxu0 0.0
    %1905 = vmatpush1.msra.mxu0 0.0
    %1906 = vmatprep.subr.mxu0 0.0
    %1907 = vmatpush1.msra.mxu0 0.0
    %1908 = vmatprep.subr.mxu0 0.0
    %1909 = vmatpush1.msra.mxu0 0.0
    %1910 = vmatprep.subr.mxu0 0.0
    %1911 = vmatpush1.msra.mxu0 0.0
    %1912 = vmatprep.mubr.f32.mxu0 0.0
    %1913 = vmatmul.mubr.f32.gmra.mrb[0].mxu0 %v1843
    %v1914 = vpop.f32.mrb[0].mxu0
    %v1915 = vadd.f32 %v1841, %v1914
    %v1916 = vpop.f32.mrb[0].mxu0
    %1917 = vmatprep.mubr.f32.mxu0 0.0
    %1918 = vmatmul.mubr.f32.gmra.mrb[0].mxu0 %v1846
    %v1919 = vpop.f32.mrb[0].mxu0
    %v1920 = vadd.f32 %v1841, %v1919
    %v1921 = vpop.f32.mrb[0].mxu0
    %1922 = vdwg.mxu0
    %v1923 = vmax.f32 %v1915, 0.0
    %v1924 = vmax.f32 %v1920, 0.0
    %v1925 = vlaneseq
    %v1926 = vshrl.u32 %v1925, 7
    %v1927 = vsub.s32 1, %v1926
    %v1928 = vrot.slane %v1837, %v1927
    %v1930 = vsel %vm196, %v1923, 0
    %v1933 = vsel %vm196, %v1924, 0
    %1935 = vmatprep.subr.mxu0 0.0
    %1936 = vmatpush1.msra.mxu0 %v1832
    %1937 = vmatprep.subr.mxu0 0.0
    %1938 = vmatpush1.msra.mxu0 %v1833
    %1939 = vmatprep.subr.mxu0 0.0
    %1940 = vmatpush1.msra.mxu0 %v1834
    %1941 = vmatprep.subr.mxu0 0.0
    %1942 = vmatpush1.msra.mxu0 %v1835
    %1943 = vmatprep.subr.mxu0 0.0
    %1944 = vmatpush1.msra.mxu0 0.0
    %1945 = vmatprep.subr.mxu0 0.0
    %1946 = vmatpush1.msra.mxu0 0.0
    %1947 = vmatprep.subr.mxu0 0.0
    %1948 = vmatpush1.msra.mxu0 0.0
    %1949 = vmatprep.subr.mxu0 0.0
    %1950 = vmatpush1.msra.mxu0 0.0
    %1951 = vmatprep.subr.mxu0 0.0
    %1952 = vmatpush1.msra.mxu0 0.0
    %1953 = vmatprep.subr.mxu0 0.0
    %1954 = vmatpush1.msra.mxu0 0.0
    %1955 = vmatprep.subr.mxu0 0.0
    %1956 = vmatpush1.msra.mxu0 0.0
    %1957 = vmatprep.subr.mxu0 0.0
    %1958 = vmatpush1.msra.mxu0 0.0
    %1959 = vmatprep.subr.mxu0 0.0
    %1960 = vmatpush1.msra.mxu0 0.0
    %1961 = vmatprep.subr.mxu0 0.0
    %1962 = vmatpush1.msra.mxu0 0.0
    %1963 = vmatprep.subr.mxu0 0.0
    %1964 = vmatpush1.msra.mxu0 0.0
    %1965 = vmatprep.subr.mxu0 0.0
    %1966 = vmatpush1.msra.mxu0 0.0
    %1967 = vmatprep.subr.mxu0 0.0
    %1968 = vmatpush1.msra.mxu0 0.0
    %1969 = vmatprep.subr.mxu0 0.0
    %1970 = vmatpush1.msra.mxu0 0.0
    %1971 = vmatprep.subr.mxu0 0.0
    %1972 = vmatpush1.msra.mxu0 0.0
    %1973 = vmatprep.subr.mxu0 0.0
    %1974 = vmatpush1.msra.mxu0 0.0
    %1975 = vmatprep.subr.mxu0 0.0
    %1976 = vmatpush1.msra.mxu0 0.0
    %1977 = vmatprep.subr.mxu0 0.0
    %1978 = vmatpush1.msra.mxu0 0.0
    %1979 = vmatprep.subr.mxu0 0.0
    %1980 = vmatpush1.msra.mxu0 0.0
    %1981 = vmatprep.subr.mxu0 0.0
    %1982 = vmatpush1.msra.mxu0 0.0
    %1983 = vmatprep.subr.mxu0 0.0
    %1984 = vmatpush1.msra.mxu0 0.0
    %1985 = vmatprep.subr.mxu0 0.0
    %1986 = vmatpush1.msra.mxu0 0.0
    %1987 = vmatprep.subr.mxu0 0.0
    %1988 = vmatpush1.msra.mxu0 0.0
    %1989 = vmatprep.subr.mxu0 0.0
    %1990 = vmatpush1.msra.mxu0 0.0
    %1991 = vmatprep.subr.mxu0 0.0
    %1992 = vmatpush1.msra.mxu0 0.0
    %1993 = vmatprep.subr.mxu0 0.0
    %1994 = vmatpush1.msra.mxu0 0.0
    %1995 = vmatprep.subr.mxu0 0.0
    %1996 = vmatpush1.msra.mxu0 0.0
    %1997 = vmatprep.subr.mxu0 0.0
    %1998 = vmatpush1.msra.mxu0 0.0
    %1999 = vmatprep.mubr.f32.mxu0 0.0
    %2000 = vmatmul.mubr.f32.gmra.mrb[0].mxu0 %v1930
    %v2001 = vpop.f32.mrb[0].mxu0
    %v2002 = vadd.f32 %v1928, %v2001
    %v2003 = vpop.f32.mrb[0].mxu0
    %2004 = vmatprep.mubr.f32.mxu0 0.0
    %2005 = vmatmul.mubr.f32.gmra.mrb[0].mxu0 %v1933
    %v2006 = vpop.f32.mrb[0].mxu0
    %v2007 = vadd.f32 %v1928, %v2006
    %v2008 = vpop.f32.mrb[0].mxu0
    %2009 = vdwg.mxu0
    %2010 = vst [vmem:[%s3] sm:$0xff] %v2002
    %2011 = vst [vmem:[%s3 + $0x8] sm:$0xff] %v2007
    // Predicated region
    $region22: #{tf_enc_code_decoder.1} parent=1 // pred_check
      _
    $region23: #{tf_enc_code_decoder.1} parent=1 // pred_check_branch
      %2013 = sbr.rel (0) target = $region25
    $region24: #{tf_enc_code_decoder.1} parent=1 // pred_region
      _
    $region25: #{tf_enc_code_decoder.1} parent=1 // pred_fallthru
      _
    // Predicated region
    $region26: #{tf_enc_code_decoder.1} parent=1 // pred_check
      _
    $region27: #{tf_enc_code_decoder.1} parent=1 // pred_check_branch
      %2015 = sbr.rel (0) target = $region29
    $region28: #{tf_enc_code_decoder.1} parent=1 // pred_region
      _
    $region29: #{tf_enc_code_decoder.1} parent=1 // pred_fallthru
      _
    %2016 = vsyncpa [#allocation3], 1
    %2017 = vsyncpa [#allocation5], 1

</llo_original>
